<compile_context>
chip_gen: v7x
topology: tpu7x:2x2x1
jax: 0.10.0
libtpu: 0.0.40
codegen_flags: <defaults>
</compile_context>

<pallas_src>
import math
from functools import partial

import numpy as np
import jax
import jax.numpy as jnp
from jax.experimental import pallas as pl
from jax.experimental.pallas import tpu as pltpu

BN_EPS = 1e-3            # EfficientNet batch_norm_epsilon
WIDTH_COEF = 2.0         # efficientnet-b7
DEPTH_COEF = 3.1
DEPTH_DIVISOR = 8


def _pick_vmem_limit():
    """Generation-aware VMEM limit (v7x has only 64 MiB per TensorCore)."""
    cap = None
    try:
        info = pltpu.get_tpu_info()
        cap = getattr(info, "vmem_capacity_bytes", None)
    except Exception:
        cap = None
    if cap is None:
        return 48 * 1024 * 1024                    # safe on every generation
    if cap >= 128 * 1024 * 1024:
        return 100 * 1024 * 1024                   # v5e / v6e
    return min(48 * 1024 * 1024, (int(cap) * 3) // 4)   # v7x


_VMEM_LIMIT = _pick_vmem_limit()

BASE_BLOCKS = [
    # (num_repeat, kernel, stride, expand_ratio, in_filters, out_filters, se_ratio)
    (1, 3, 1, 1, 32, 16, 0.25),
    (2, 3, 2, 6, 16, 24, 0.25),
    (2, 5, 2, 6, 24, 40, 0.25),
    (3, 3, 2, 6, 40, 80, 0.25),
    (3, 5, 1, 6, 80, 112, 0.25),
    (4, 5, 2, 6, 112, 192, 0.25),
    (1, 3, 1, 6, 192, 320, 0.25),
]


# --------------------------------------------------------------------------
# Config helpers
# --------------------------------------------------------------------------
def round_filters(filters):
    filters *= WIDTH_COEF
    new_f = max(DEPTH_DIVISOR,
                int(filters + DEPTH_DIVISOR / 2) // DEPTH_DIVISOR * DEPTH_DIVISOR)
    if new_f < 0.9 * filters:
        new_f += DEPTH_DIVISOR
    return int(new_f)


def round_repeats(repeats):
    return int(math.ceil(DEPTH_COEF * repeats))


def build_block_configs():
    cfgs = []
    for (r, k, s, e, ci, co, se) in BASE_BLOCKS:
        ci_s, co_s, reps = round_filters(ci), round_filters(co), round_repeats(r)
        for i in range(reps):
            cin = ci_s if i == 0 else co_s
            stride = s if i == 0 else 1
            cfgs.append(dict(k=k, stride=stride, e=e, cin=cin, cout=co_s,
                             se_ch=max(1, int(cin * se)),
                             id_skip=(stride == 1 and cin == co_s)))
    return cfgs


BLOCK_CFGS = build_block_configs()


def _same_pad_1d(n, k, s):
    o = -(-n // s)                              # ceil(n / s)
    pad = max((o - 1) * s + k - n, 0)
    return o, pad // 2, pad - pad // 2


# --------------------------------------------------------------------------
# Pallas kernels
# --------------------------------------------------------------------------
def _matmul_bn_act_kernel(*refs, act, has_res):
    """(bm, K)@(K, N) on the MXU (bf16 in, f32 acc) + folded-BN affine
    (+ swish) (+ fused residual add)."""
    if has_res:
        x_ref, w_ref, s_ref, b_ref, r_ref, o_ref = refs
    else:
        x_ref, w_ref, s_ref, b_ref, o_ref = refs
        r_ref = None
    y = jnp.dot(x_ref[...].astype(jnp.bfloat16), w_ref[...],
                preferred_element_type=jnp.float32)
    y = y * s_ref[...] + b_ref[...]
    if act == "swish":
        y = y * jax.nn.sigmoid(y)
    if has_res:
        y = y + r_ref[...]
    o_ref[...] = y.astype(o_ref.dtype)


def matmul_bn_act(x, w, scale, bias, act="none", residual=None):
    """x: (M, K) f32; w: (K, N) bf16; scale/bias: (1, N) folded BN affine;
    residual: optional (M, N) f32 added after the affine/activation."""
    M, K = x.shape
    N = w.shape[1]
    if M % 512 == 0 and M // 512 >= 2:
        bm = 512                                   # >=2 parallel steps (dual TC)
    elif M % 256 == 0 and M // 256 >= 2:
        bm = 256
    else:
        bm = M

    def _bytes(bm_):                               # rough double-buffered estimate
        b = 2 * bm_ * K * 4 + 2 * K * N * 2 + 2 * bm_ * N * 4 + 4 * N * 4
        if residual is not None:
            b += 2 * bm_ * N * 4
        return b

    while bm % 2 == 0 and bm > 8 and _bytes(bm) > (_VMEM_LIMIT * 3) // 4:
        bm //= 2

    grid = (M // bm,)
    in_specs = [
        pl.BlockSpec((bm, K), lambda i: (i, 0)),
        pl.BlockSpec((K, N), lambda i: (0, 0)),
        pl.BlockSpec((1, N), lambda i: (0, 0)),
        pl.BlockSpec((1, N), lambda i: (0, 0)),
    ]
    args = [x, w, scale, bias]
    if residual is not None:
        in_specs.append(pl.BlockSpec((bm, N), lambda i: (i, 0)))
        args.append(residual)

    return pl.pallas_call(
        partial(_matmul_bn_act_kernel, act=act, has_res=residual is not None),
        out_shape=jax.ShapeDtypeStruct((M, N), jnp.float32),
        grid=grid,
        in_specs=in_specs,
        out_specs=pl.BlockSpec((bm, N), lambda i: (i, 0)),
        compiler_params=pltpu.CompilerParams(
            dimension_semantics=("parallel",),
            vmem_limit_bytes=_VMEM_LIMIT),
    )(*args)


def _dwse_kernel(ph_ref, dww_ref, dws_ref, dwb_ref,
                 sw1_ref, sb1_ref, sw2_ref, sb2_ref, o_ref, *, k, s, out_dhw):
    """Depthwise kxkxk conv (tap accumulation over stride-phase views) + folded
    BN + swish + Squeeze-Excite gating.  Output: (B, Do, Ho, Wo, C)."""
    Do, Ho, Wo = out_dhw
    B = o_ref.shape[0]
    C = o_ref.shape[-1]
    acc = jnp.zeros((B, Do, Ho, Wo, C), jnp.float32)
    t = 0
    for kd in range(k):
        d0 = kd // s
        for kh in range(k):
            h0 = kh // s
            for kw in range(k):
                w0 = kw // s
                p = ((kd % s) * s + (kh % s)) * s + (kw % s)
                win = ph_ref[p * B:(p + 1) * B,
                             d0:d0 + Do, h0:h0 + Ho, w0:w0 + Wo, :]
                acc = acc + win * dww_ref[t]            # dww_ref[t]: (1, C)
                t += 1
    y = acc * dws_ref[...] + dwb_ref[...]
    y = y * jax.nn.sigmoid(y)                           # swish (f32 on VPU/EUP)
    inv_s = 1.0 / float(Do * Ho * Wo)
    pooled = jnp.sum(y, axis=(1, 2, 3)) * inv_s         # (B, C) global avg pool
    z = jnp.dot(pooled, sw1_ref[...], preferred_element_type=jnp.float32) + sb1_ref[...]
    z = z * jax.nn.sigmoid(z)
    g = jax.nn.sigmoid(
        jnp.dot(z, sw2_ref[...], preferred_element_type=jnp.float32) + sb2_ref[...])
    o_ref[...] = (y * g[:, None, None, None, :]).astype(o_ref.dtype)


def _dwse_call(phases, dw_w, dw_s, dw_b, sw1, sb1, sw2, sb2, *, k, s, out_dhw):
    B = phases.shape[0] // (s * s * s)
    C = phases.shape[-1]
    Do, Ho, Wo = out_dhw
    return pl.pallas_call(
        partial(_dwse_kernel, k=k, s=s, out_dhw=out_dhw),
        out_shape=jax.ShapeDtypeStruct((B, Do, Ho, Wo, C), jnp.float32),
        compiler_params=pltpu.CompilerParams(vmem_limit_bytes=_VMEM_LIMIT),
    )(phases, dw_w, dw_s, dw_b, sw1, sb1, sw2, sb2)


def _mbconv_tail1_kernel(pp_ref, dww_ref, dws_ref, dwb_ref,
                         sw1_ref, sb1_ref, sw2_ref, sb2_ref,
                         pw_ref, ps_ref, pb_ref, *rest, has_res):
    """Fully fused MBConv tail for blocks whose output spatial size is 1 voxel:
    depthwise conv (k^3 taps) + BN + swish + SE + projection matmul + BN
    (+ residual).  pp_ref: (k^3, B, C) gathered taps; output: (B, Cout)."""
    if has_res:
        res_ref, o_ref = rest
    else:
        (o_ref,) = rest
    T, B, C = pp_ref.shape
    acc = jnp.zeros((B, C), jnp.float32)
    for t in range(T):
        acc = acc + pp_ref[t] * dww_ref[t]              # (B, C) * (1, C)
    y = acc * dws_ref[...] + dwb_ref[...]
    y = y * jax.nn.sigmoid(y)                           # swish
    # SE: spatial volume is one voxel -> pooled activation == y
    z = jnp.dot(y, sw1_ref[...], preferred_element_type=jnp.float32) + sb1_ref[...]
    z = z * jax.nn.sigmoid(z)
    g = jax.nn.sigmoid(
        jnp.dot(z, sw2_ref[...], preferred_element_type=jnp.float32) + sb2_ref[...])
    yg = y * g
    out = jnp.dot(yg.astype(jnp.bfloat16), pw_ref[...],
                  preferred_element_type=jnp.float32)
    out = out * ps_ref[...] + pb_ref[...]
    if has_res:
        out = out + res_ref[...]
    o_ref[...] = out.astype(o_ref.dtype)


def _mbconv_tail1_call(patches, dw_w, dw_s, dw_b, sw1, sb1, sw2, sb2,
                       pw, ps, pb, res):
    T, B, C = patches.shape
    Cout = pw.shape[1]
    args = [patches, dw_w, dw_s, dw_b, sw1, sb1, sw2, sb2, pw, ps, pb]
    if res is not None:
        args.append(res)
    return pl.pallas_call(
        partial(_mbconv_tail1_kernel, has_res=res is not None),
        out_shape=jax.ShapeDtypeStruct((B, Cout), jnp.float32),
        compiler_params=pltpu.CompilerParams(vmem_limit_bytes=_VMEM_LIMIT),
    )(*args)


# --------------------------------------------------------------------------
# JAX-side glue (padding / stride-phase decomposition) + block forward
# --------------------------------------------------------------------------
def _phase_decompose(xp, s):
    """Split the padded activation into its s^3 stride phases so each depthwise
    tap becomes a contiguous window inside the kernel.  Total size ~= input
    size (no k^3 blow-up).  Returns (s^3 * B, Dc, Hc, Wc, C)."""
    if s == 1:
        return xp
    B, Dp, Hp, Wp, C = xp.shape
    Dc, Hc, Wc = -(-Dp // s), -(-Hp // s), -(-Wp // s)
    phases = []
    for rd in range(s):
        for rh in range(s):
            for rw in range(s):
                ph = xp[:, rd::s, rh::s, rw::s, :]
                ph = jnp.pad(ph, ((0, 0),
                                  (0, Dc - ph.shape[1]),
                                  (0, Hc - ph.shape[2]),
                                  (0, Wc - ph.shape[3]),
                                  (0, 0)))
                phases.append(ph)
    return jnp.concatenate(phases, axis=0)


@partial(jax.jit, static_argnames=("k", "s", "id_skip"))
def mbconv_block(x, expand_w, expand_scale, expand_bias,
                 dw_w, dw_scale, dw_bias,
                 se_w1, se_b1, se_w2, se_b2,
                 proj_w, proj_scale, proj_bias,
                 *, k, s, id_skip):
    B, D, H, W, Cin = x.shape
    inputs = x
    if expand_w is not None:
        y = matmul_bn_act(x.reshape(B * D * H * W, Cin), expand_w,
                          expand_scale, expand_bias, act="swish")
        x = y.reshape(B, D, H, W, y.shape[-1])
    C = x.shape[-1]
    Cout = proj_w.shape[1]

    Do, pd0, pd1 = _same_pad_1d(D, k, s)
    Ho, ph0, ph1 = _same_pad_1d(H, k, s)
    Wo, pw0, pw1 = _same_pad_1d(W, k, s)
    xp = jnp.pad(x, ((0, 0), (pd0, pd1), (ph0, ph1), (pw0, pw1), (0, 0)))
    res = inputs if id_skip else None

    if Do == 1 and Ho == 1 and Wo == 1:
        # Padded spatial extent is exactly k^3 -> gather taps as (k^3, B, C).
        T = k * k * k
        patches = jnp.transpose(xp.reshape(B, T, C), (1, 0, 2))
        res2 = res.reshape(B, Cout) if res is not None else None
        out = _mbconv_tail1_call(patches, dw_w, dw_scale, dw_bias,
                                 se_w1, se_b1, se_w2, se_b2,
                                 proj_w, proj_scale, proj_bias, res2)
        return out.reshape(B, 1, 1, 1, Cout)

    phases = _phase_decompose(xp, s)
    gated = _dwse_call(phases, dw_w, dw_scale, dw_bias,
                       se_w1, se_b1, se_w2, se_b2,
                       k=k, s=s, out_dhw=(Do, Ho, Wo))
    M2 = B * Do * Ho * Wo
    res2 = res.reshape(M2, Cout) if res is not None else None
    y = matmul_bn_act(gated.reshape(M2, C), proj_w, proj_scale, proj_bias,
                      act="none", residual=res2)
    return y.reshape(B, Do, Ho, Wo, Cout)


@jax.jit
def stem_conv_bn_swish(x, w, scale, bias):
    """x: (B, D, H, W, 1); 3x3x3 stride-2 'same' conv via im2col (K padded 27->32)
    feeding the fused MXU matmul kernel."""
    B, D, H, W, _ = x.shape
    k, s = 3, 2
    Do, pd0, pd1 = _same_pad_1d(D, k, s)
    Ho, ph0, ph1 = _same_pad_1d(H, k, s)
    Wo, pw0, pw1 = _same_pad_1d(W, k, s)
    xp = jnp.pad(x[..., 0], ((0, 0), (pd0, pd1), (ph0, ph1), (pw0, pw1)))
    taps = []
    for kd in range(k):
        for kh in range(k):
            for kw in range(k):
                taps.append(xp[:, kd:kd + (Do - 1) * s + 1:s,
                                  kh:kh + (Ho - 1) * s + 1:s,
                                  kw:kw + (Wo - 1) * s + 1:s])
    patches = jnp.stack(taps, axis=-1).reshape(B * Do * Ho * Wo, k * k * k)
    patches = jnp.pad(patches, ((0, 0), (0, w.shape[0] - k * k * k)))
    y = matmul_bn_act(patches, w, scale, bias, act="swish")
    return y.reshape(B, Do, Ho, Wo, w.shape[1])


@jax.jit
def head_and_fc(x, head_w, head_scale, head_bias, fc_w, fc_one, fc_b):
    B, D, H, W, C = x.shape
    y = matmul_bn_act(x.reshape(B * D * H * W, C), head_w, head_scale,
                      head_bias, act="swish")
    y = y.reshape(B, D * H * W, -1)
    pooled = jnp.mean(y, axis=1)                       # adaptive_avg_pool3d(1)
    # TODO(synk): Dropout(p=0.5) is eval-mode identity here.
    return matmul_bn_act(pooled, fc_w, fc_one, fc_b, act="none")


# --------------------------------------------------------------------------
# Deterministic parameter init (eval-mode folded BN)
# --------------------------------------------------------------------------
def init_params(seed=0):
    rng = np.random.default_rng(seed)

    def conv_w(shape, fan_in):
        return (rng.standard_normal(shape).astype(np.float32)
                * np.float32(math.sqrt(2.0 / fan_in)))

    def bn_fold(c):
        gamma = np.ones(c, np.float32)
        beta = np.zeros(c, np.float32)
        mean = np.zeros(c, np.float32)
        var = np.ones(c, np.float32)
        scale = gamma / np.sqrt(var + BN_EPS)
        bias = beta - mean * scale
        return jnp.asarray(scale[None, :]), jnp.asarray(bias[None, :])

    params = {}
    stem_out = round_filters(32)                       # 64
    w27 = conv_w((27, stem_out), 27)
    w32 = np.zeros((32, stem_out), np.float32)
    w32[:27] = w27                                     # K padded 27 -> 32
    params["stem_w"] = jnp.asarray(w32, jnp.bfloat16)
    params["stem_scale"], params["stem_bias"] = bn_fold(stem_out)

    blocks = []
    for cfg in BLOCK_CFGS:
        cin, cout, e, k = cfg["cin"], cfg["cout"], cfg["e"], cfg["k"]
        cmid = cin * e
        cse = cfg["se_ch"]
        T = k * k * k
        p = {}
        if e != 1:
            p["expand_w"] = jnp.asarray(conv_w((cin, cmid), cin), jnp.bfloat16)
            p["expand_scale"], p["expand_bias"] = bn_fold(cmid)
        else:
            p["expand_w"] = None
            p["expand_scale"] = None
            p["expand_bias"] = None
        p["dw_w"] = jnp.asarray(conv_w((T, 1, cmid), T))
        p["dw_scale"], p["dw_bias"] = bn_fold(cmid)
        p["se_w1"] = jnp.asarray(conv_w((cmid, cse), cmid))
        p["se_b1"] = jnp.zeros((1, cse), jnp.float32)
        p["se_w2"] = jnp.asarray(conv_w((cse, cmid), cse))
        p["se_b2"] = jnp.zeros((1, cmid), jnp.float32)
        p["proj_w"] = jnp.asarray(conv_w((cmid, cout), cmid), jnp.bfloat16)
        p["proj_scale"], p["proj_bias"] = bn_fold(cout)
        blocks.append(p)
    params["blocks"] = blocks

    head_in = BLOCK_CFGS[-1]["cout"]                   # 640
    head_out = round_filters(1280)                     # 2560
    params["head_w"] = jnp.asarray(conv_w((head_in, head_out), head_in),
                                   jnp.bfloat16)
    params["head_scale"], params["head_bias"] = bn_fold(head_out)
    params["fc_w"] = jnp.asarray(conv_w((head_out, 1), head_out), jnp.bfloat16)
    params["fc_b"] = jnp.zeros((1, 1), jnp.float32)
    params["fc_scale_one"] = jnp.ones((1, 1), jnp.float32)
    return params


# --------------------------------------------------------------------------
# Forward pass (Model.forward, eval-mode)
# --------------------------------------------------------------------------
def forward(params, x_ncdhw):
    # PyTorch NCDHW (B, 1, D, H, W) -> channels-last (B, D, H, W, 1)
    x = jnp.transpose(x_ncdhw.astype(jnp.float32), (0, 2, 3, 4, 1))
    x = stem_conv_bn_swish(x, params["stem_w"], params["stem_scale"],
                           params["stem_bias"])
    for p, cfg in zip(params["blocks"], BLOCK_CFGS):
        # TODO(synk): drop_connect (stochastic depth) omitted -- eval-mode identity.
        x = mbconv_block(x,
                         p["expand_w"], p["expand_scale"], p["expand_bias"],
                         p["dw_w"], p["dw_scale"], p["dw_bias"],
                         p["se_w1"], p["se_b1"], p["se_w2"], p["se_b2"],
                         p["proj_w"], p["proj_scale"], p["proj_bias"],
                         k=cfg["k"], s=cfg["stride"], id_skip=cfg["id_skip"])
    # TODO(synk): train-mode BatchNorm batch-stats are eval-mode folded here.
    return head_and_fc(x, params["head_w"], params["head_scale"],
                       params["head_bias"], params["fc_w"],
                       params["fc_scale_one"], params["fc_b"])      # (B, 1)


if __name__ == "__main__":
    key = jax.random.PRNGKey(0)
    x = jax.random.normal(key, (2, 1, 16, 16, 16), dtype=jnp.float32)  # NCDHW, in_channels=1
    params = init_params(seed=0)
    out = forward(params, x)
    out = jax.block_until_ready(out)
    assert out.shape == (2, 1) and bool(jnp.all(jnp.isfinite(out)))
    print("KERNEL_OK")
</pallas_src>

<mosaic_0001>
module attributes {stable_mosaic.version = 11 : i64} {
  func.func @_matmul_bn_act_kernel(%arg0: i32, %arg1: memref<512x32xf32, #tpu.memory_space<vmem>>, %arg2: memref<32x64xbf16, #tpu.memory_space<vmem>>, %arg3: memref<1x64xf32, #tpu.memory_space<vmem>>, %arg4: memref<1x64xf32, #tpu.memory_space<vmem>>, %arg5: memref<512x64xf32, #tpu.memory_space<vmem>>) attributes {dimension_semantics = [#tpu.dimension_semantics<parallel>], iteration_bounds = array<i64: 2>, scalar_prefetch = 0 : i64, scratch_operands = 0 : i64, tpu.core_type = #tpu.core_type<tc>, window_params = [{transform_indices = @transform_0, window_bounds = array<i64: 512, 32>}, {pipeline_mode = #tpu.pipeline_mode<synchronous>, transform_indices = @transform_1, window_bounds = array<i64: 32, 64>}, {pipeline_mode = #tpu.pipeline_mode<synchronous>, transform_indices = @transform_2, window_bounds = array<i64: 1, 64>}, {pipeline_mode = #tpu.pipeline_mode<synchronous>, transform_indices = @transform_3, window_bounds = array<i64: 1, 64>}, {transform_indices = @transform_4, window_bounds = array<i64: 512, 64>}]} {
    %c0 = arith.constant 0 : index
    %c0_0 = arith.constant 0 : index
    %0 = vector.load %arg1[%c0, %c0_0] : memref<512x32xf32, #tpu.memory_space<vmem>>, vector<512x32xf32>
    %1 = arith.truncf %0 : vector<512x32xf32> to vector<512x32xbf16>
    %c0_1 = arith.constant 0 : index
    %c0_2 = arith.constant 0 : index
    %2 = vector.load %arg2[%c0_1, %c0_2] : memref<32x64xbf16, #tpu.memory_space<vmem>>, vector<32x64xbf16>
    %cst = arith.constant dense<0.000000e+00> : vector<512x64xf32>
    %3 = tpu.matmul %1, %2, %cst {dimension_numbers = #tpu.dot_dimension_numbers<[1], [0], [0], [1], [0, 0, 1, 1], [], []>} : vector<512x32xbf16>, vector<32x64xbf16>, vector<512x64xf32> -> vector<512x64xf32>
    %c0_3 = arith.constant 0 : index
    %c0_4 = arith.constant 0 : index
    %4 = vector.load %arg3[%c0_3, %c0_4] : memref<1x64xf32, #tpu.memory_space<vmem>>, vector<1x64xf32>
    %5 = vector.broadcast %4 : vector<1x64xf32> to vector<512x64xf32>
    %6 = arith.mulf %3, %5 : vector<512x64xf32>
    %c0_5 = arith.constant 0 : index
    %c0_6 = arith.constant 0 : index
    %7 = vector.load %arg4[%c0_5, %c0_6] : memref<1x64xf32, #tpu.memory_space<vmem>>, vector<1x64xf32>
    %8 = vector.broadcast %7 : vector<1x64xf32> to vector<512x64xf32>
    %9 = arith.addf %6, %8 : vector<512x64xf32>
    %10 = arith.negf %9 : vector<512x64xf32>
    %11 = math.exp %10 : vector<512x64xf32>
    %cst_7 = arith.constant 1.000000e+00 : f32
    %12 = vector.broadcast %cst_7 : f32 to vector<512x64xf32>
    %13 = arith.addf %12, %11 : vector<512x64xf32>
    %14 = arith.divf %12, %13 : vector<512x64xf32>
    %15 = arith.mulf %9, %14 : vector<512x64xf32>
    %c0_8 = arith.constant 0 : index
    %c0_9 = arith.constant 0 : index
    %16 = vector.load %arg5[%c0_8, %c0_9] : memref<512x64xf32, #tpu.memory_space<vmem>>, vector<512x64xf32>
    tpu.vector_store %arg5[%c0_8, %c0_9], %15 {strides = array<i32>} : memref<512x64xf32, #tpu.memory_space<vmem>>, vector<512x64xf32>,
    return
  }
  func.func @transform_0(%arg0: i32) -> (i32, i32) {
    %c0_i32 = arith.constant 0 : i32
    %c0_i32_0 = arith.constant 0 : i32
    return %arg0, %c0_i32 : i32, i32
  }
  func.func @transform_1(%arg0: i32) -> (i32, i32) {
    %c0_i32 = arith.constant 0 : i32
    %c0_i32_0 = arith.constant 0 : i32
    %c0_i32_1 = arith.constant 0 : i32
    return %c0_i32, %c0_i32_0 : i32, i32
  }
  func.func @transform_2(%arg0: i32) -> (i32, i32) {
    %c0_i32 = arith.constant 0 : i32
    %c0_i32_0 = arith.constant 0 : i32
    %c0_i32_1 = arith.constant 0 : i32
    return %c0_i32, %c0_i32_0 : i32, i32
  }
  func.func @transform_3(%arg0: i32) -> (i32, i32) {
    %c0_i32 = arith.constant 0 : i32
    %c0_i32_0 = arith.constant 0 : i32
    %c0_i32_1 = arith.constant 0 : i32
    return %c0_i32, %c0_i32_0 : i32, i32
  }
  func.func @transform_4(%arg0: i32) -> (i32, i32) {
    %c0_i32 = arith.constant 0 : i32
    %c0_i32_0 = arith.constant 0 : i32
    return %arg0, %c0_i32 : i32, i32
  }
}

</mosaic_0001>

<llo_original>
// kernel: stem_conv_bn_swish.1
$region0: #{stem_conv_bn_swish.1}
  #allocation0 [shape = 'u32[]', space=smem, size = 0x4, offset = 0x4, fixed_abs, tag = 'smem constant byte address 0x4 - core index']
  #allocation1 [shape = 'u32[144,128]{1,0:T(1,128)}', space=vmem, size = 0x12000, scoped, tag = 'internal scratch']
  %s0 = inlined_call_operand.vmem [shape: f32[1024,32], index: 0, kind: input, shape index: {}]
  %s1 = inlined_call_operand.vmem [shape: bf16[32,64], index: 1, kind: input, shape index: {}]
  %s2 = inlined_call_operand.vmem [shape: f32[1,64], index: 2, kind: input, shape index: {}]
  %s3 = inlined_call_operand.vmem [shape: f32[1,64], index: 3, kind: input, shape index: {}]
  %s4 = inlined_call_operand.hbm [shape: f32[1024,64], index: 4, kind: output, shape index: {}]
  %s5 = sld [smem:[#allocation0]]
  $region49: #{stem_conv_bn_swish.1} parent=0
    _
  %s7 = ssub.s32 1, %s5
  %s8 = scalar_select 0, %s7, %s5
  $region1: #{stem_conv_bn_swish.1} parent=0
    #allocation2 [shape = 'u8[524288]{0}', space=vmem, size = 0x80000, scoped, tag = 'output window, operand 0']
    #allocation3 [shape = 's32[2]{0}', space=sflag, size = 0x8, scoped, tag = 'scoped memory for stem_conv_bn_swish.1']
    %9 = vsyncpa [#allocation3], 0
    %s10 = scalar_lea.sflag [#allocation3], 1
    %11 = vsyncpa %s10, 0
    loop: start=0, step=1, limit=4
    $region2: #{stem_conv_bn_swish.1} parent=1 // loop_pre_header
      _
    $region3: #{stem_conv_bn_swish.1} parent=1 // loop_header
      %s13 = sphi 0, %s17
      %p14 = scmp.ge.s32.totalorder %s13, 4
      %s23 = sphi 0, %s25
      %s26 = sphi 0, %s23
      %s27 = sphi 0, %s26
      %s43 = sphi 0, %s27
      %s47 = sphi 0, %s47
      %s49 = sphi 0, %s47
      %s50 = sphi 0, %s49
      %s64 = sphi 0, %s50
      %s68 = sphi 0, %s68
      %s70 = sphi 0, %s68
      %s71 = sphi 0, %s70
      %s85 = sphi 0, %s71
      %s89 = sphi 0, %s89
      %s91 = sphi 0, %s89
      %s92 = sphi 0, %s91
      %s106 = sphi 0, %s92
      %s112 = sphi 0, %s114
      %s115 = sphi 0, %s112
      %s116 = sphi 0, %s115
      %s132 = sphi 0, %s116
    $region4: #{stem_conv_bn_swish.1} parent=1 // loop_header_branch
      %16 = sbr.rel (%p14) target = $region8
    $region5: #{stem_conv_bn_swish.1} parent=1 // loop_body
      %s18 = ssub.s32 %s13, 1
      %s19 = ssub.s32 %s13, 2
      %s20 = sadd.s32 %s13, 1
      %s21 = ssub.s32 %s13, %s20
      %p22 = scmp.eq.s32.totalorder %s21, 0
      %s24 = sadd.s32 %s23, 1
      %s25 = scalar_select %p22, %s23, %s24
      %p28 = pneg %p22
      %p29 = scmp.eq.s32.totalorder %s13, 1
      %p30 = por %p28, %p29
      %p31 = scmp.ne.s32.totalorder %s23, %s26
      %p32 = scmp.eq.s32.totalorder %s13, 0
      %p33 = por %p31, %p32
      %p34 = scmp.ne.s32.totalorder %s23, %s26
      %p35 = scmp.eq.s32.totalorder %s18, 1
      %p36 = por %p34, %p35
      %p37 = scmp.ne.s32.totalorder %s26, %s27
      %p38 = scmp.eq.s32.totalorder %s18, 0
      %p39 = por %p37, %p38
      %p40 = scmp.ne.s32.totalorder %s26, %s27
      %p41 = scmp.eq.s32.totalorder %s19, 1
      %p42 = por %p40, %p41
      %p44 = scmp.ne.s32.totalorder %s27, %s43
      %p45 = scmp.eq.s32.totalorder %s19, 0
      %p46 = por %p44, %p45
      %s48 = sadd.s32 %s47, 1
      %p51 = scmp.eq.s32.totalorder %s13, 1
      %p52 = scmp.ne.s32.totalorder %s47, %s49
      %p53 = scmp.eq.s32.totalorder %s13, 0
      %p54 = por %p52, %p53
      %p55 = scmp.ne.s32.totalorder %s47, %s49
      %p56 = scmp.eq.s32.totalorder %s18, 1
      %p57 = por %p55, %p56
      %p58 = scmp.ne.s32.totalorder %s49, %s50
      %p59 = scmp.eq.s32.totalorder %s18, 0
      %p60 = por %p58, %p59
      %p61 = scmp.ne.s32.totalorder %s49, %s50
      %p62 = scmp.eq.s32.totalorder %s19, 1
      %p63 = por %p61, %p62
      %p65 = scmp.ne.s32.totalorder %s50, %s64
      %p66 = scmp.eq.s32.totalorder %s19, 0
      %p67 = por %p65, %p66
      %s69 = sadd.s32 %s68, 1
      %p72 = scmp.eq.s32.totalorder %s13, 1
      %p73 = scmp.ne.s32.totalorder %s68, %s70
      %p74 = scmp.eq.s32.totalorder %s13, 0
      %p75 = por %p73, %p74
      %p76 = scmp.ne.s32.totalorder %s68, %s70
      %p77 = scmp.eq.s32.totalorder %s18, 1
      %p78 = por %p76, %p77
      %p79 = scmp.ne.s32.totalorder %s70, %s71
      %p80 = scmp.eq.s32.totalorder %s18, 0
      %p81 = por %p79, %p80
      %p82 = scmp.ne.s32.totalorder %s70, %s71
      %p83 = scmp.eq.s32.totalorder %s19, 1
      %p84 = por %p82, %p83
      %p86 = scmp.ne.s32.totalorder %s71, %s85
      %p87 = scmp.eq.s32.totalorder %s19, 0
      %p88 = por %p86, %p87
      %s90 = sadd.s32 %s89, 1
      %p93 = scmp.eq.s32.totalorder %s13, 1
      %p94 = scmp.ne.s32.totalorder %s89, %s91
      %p95 = scmp.eq.s32.totalorder %s13, 0
      %p96 = por %p94, %p95
      %p97 = scmp.ne.s32.totalorder %s89, %s91
      %p98 = scmp.eq.s32.totalorder %s18, 1
      %p99 = por %p97, %p98
      %p100 = scmp.ne.s32.totalorder %s91, %s92
      %p101 = scmp.eq.s32.totalorder %s18, 0
      %p102 = por %p100, %p101
      %p103 = scmp.ne.s32.totalorder %s91, %s92
      %p104 = scmp.eq.s32.totalorder %s19, 1
      %p105 = por %p103, %p104
      %p107 = scmp.ne.s32.totalorder %s92, %s106
      %p108 = scmp.eq.s32.totalorder %s19, 0
      %p109 = por %p107, %p108
      %s110 = ssub.s32 %s13, %s20
      %p111 = scmp.eq.s32.totalorder %s110, 0
      %s113 = sadd.s32 %s112, 1
      %s114 = scalar_select %p111, %s112, %s113
      %p117 = pneg %p111
      %p118 = scmp.eq.s32.totalorder %s13, 1
      %p119 = por %p117, %p118
      %p120 = scmp.ne.s32.totalorder %s112, %s115
      %p121 = scmp.eq.s32.totalorder %s13, 0
      %p122 = por %p120, %p121
      %p123 = scmp.ne.s32.totalorder %s112, %s115
      %p124 = scmp.eq.s32.totalorder %s18, 1
      %p125 = por %p123, %p124
      %p126 = scmp.ne.s32.totalorder %s115, %s116
      %p127 = scmp.eq.s32.totalorder %s18, 0
      %p128 = por %p126, %p127
      %p129 = scmp.ne.s32.totalorder %s115, %s116
      %p130 = scmp.eq.s32.totalorder %s19, 1
      %p131 = por %p129, %p130
      %p133 = scmp.ne.s32.totalorder %s116, %s132
      %p134 = scmp.eq.s32.totalorder %s19, 0
      %p135 = por %p133, %p134
      %p136 = scmp.le.s32.totalorder 1, %s13
      %p137 = scmp.lt.s32.totalorder %s13, 3
      %p138 = pnand %p136, %p137
      %p139 = pneg %p138
      // Predicated region
      $region9: #{stem_conv_bn_swish.1} parent=5 // pred_check
        _
      $region10: #{stem_conv_bn_swish.1} parent=5 // pred_check_branch
        %141 = sbr.rel (%p138) target = $region12
      $region11: #{stem_conv_bn_swish.1} parent=5 // pred_region
        %s142 = ssub.s32 %s13, 1
        // Predicated region
        $region13: #{stem_conv_bn_swish.1} parent=11 // pred_check
          %p143 = pneg %p60
        $region14: #{stem_conv_bn_swish.1} parent=11 // pred_check_branch
          %145 = sbr.rel (%p143) target = $region16
        $region15: #{stem_conv_bn_swish.1} parent=11 // pred_region
          _
        $region16: #{stem_conv_bn_swish.1} parent=11 // pred_fallthru
          _
        // Predicated region
        $region17: #{stem_conv_bn_swish.1} parent=11 // pred_check
          %p146 = pneg %p81
        $region18: #{stem_conv_bn_swish.1} parent=11 // pred_check_branch
          %148 = sbr.rel (%p146) target = $region20
        $region19: #{stem_conv_bn_swish.1} parent=11 // pred_region
          _
        $region20: #{stem_conv_bn_swish.1} parent=11 // pred_fallthru
          _
        // Predicated region
        $region21: #{stem_conv_bn_swish.1} parent=11 // pred_check
          %p149 = pneg %p102
        $region22: #{stem_conv_bn_swish.1} parent=11 // pred_check_branch
          %151 = sbr.rel (%p149) target = $region24
        $region23: #{stem_conv_bn_swish.1} parent=11 // pred_region
          _
        $region24: #{stem_conv_bn_swish.1} parent=11 // pred_fallthru
          _
      $region12: #{stem_conv_bn_swish.1} parent=5 // pred_fallthru
        _
      %p152 = scmp.lt.s32.totalorder %s13, 2
      // Predicated region
      $region25: #{stem_conv_bn_swish.1} parent=5 // pred_check
        %p153 = pneg %p152
      $region26: #{stem_conv_bn_swish.1} parent=5 // pred_check_branch
        %155 = sbr.rel (%p153) target = $region28
      $region27: #{stem_conv_bn_swish.1} parent=5 // pred_region
        // Predicated region
        $region29: #{stem_conv_bn_swish.1} parent=27 // pred_check
          %p156 = pneg %p33
        $region30: #{stem_conv_bn_swish.1} parent=27 // pred_check_branch
          %158 = sbr.rel (%p156) target = $region32
        $region31: #{stem_conv_bn_swish.1} parent=27 // pred_region
          %s159 = smul.u32 64, %s13
          %p160 = scmp.lt.s32.totalorder %s159, 127
          %s161 = scalar_select %p160, %s159, 127
          %s162 = smul.addr %s161, 8
          %s163 = scalar_lea.vmem %s0, %s162
          %s164 = smul.u32 64, %s13
        $region32: #{stem_conv_bn_swish.1} parent=27 // pred_fallthru
          _
      $region28: #{stem_conv_bn_swish.1} parent=5 // pred_fallthru
        _
      %p165 = scmp.le.s32.totalorder 1, %s13
      %p166 = scmp.lt.s32.totalorder %s13, 3
      %p167 = pnand %p165, %p166
      %p168 = pneg %p167
      // Predicated region
      $region33: #{stem_conv_bn_swish.1} parent=5 // pred_check
        _
      $region34: #{stem_conv_bn_swish.1} parent=5 // pred_check_branch
        %170 = sbr.rel (%p167) target = $region36
      $region35: #{stem_conv_bn_swish.1} parent=5 // pred_region
        %s171 = ssub.s32 %s13, 1
        %s172 = smul.u32 64, %s18
        %p173 = scmp.lt.s32.totalorder %s172, 127
        %s174 = scalar_select %p173, %s172, 127
        %s175 = smul.addr %s174, 8
        %s176 = scalar_lea.vmem %s0, %s175
        %p177 = pneg %p39
        %p178 = pneg %p36
        %p179 = pneg %p60
        %p180 = pneg %p57
        %p181 = pneg %p81
        %p182 = pneg %p78
        %p183 = pneg %p102
        %p184 = pneg %p99
        %p185 = pneg %p128
        %p186 = pneg %p125
        %s187 = sand.u32 %s115, 1
        %s188 = scalar_lea.sflag [#allocation3], %s187
        %s189 = sand.u32 %s115, 1
        %s190 = smul.addr %s189, 512
        %s191 = scalar_lea.vmem [#allocation2], %s190
        %s192 = smul.u32 64, %s18
        %p193 = scmp.lt.s32.totalorder %s192, 127
        %s194 = scalar_select %p193, %s192, 127
        %s195 = smul.addr %s194, 8
        %s196 = scalar_lea.vmem %s0, %s195
        %s197 = smul.u32 64, %s18
        %s198 = smul.u32 64, %s18
        %v200 = vld [vmem:[%s196] sm:$0xff]
        %v201 = vld [vmem:[%s196 + $0x8] sm:$0xff]
        %v202 = vld [vmem:[%s196 + $0x10] sm:$0xff]
        %v203 = vld [vmem:[%s196 + $0x18] sm:$0xff]
        %v204 = vld [vmem:[%s196 + $0x20] sm:$0xff]
        %v205 = vld [vmem:[%s196 + $0x28] sm:$0xff]
        %v206 = vld [vmem:[%s196 + $0x30] sm:$0xff]
        %v207 = vld [vmem:[%s196 + $0x38] sm:$0xff]
        %v208 = vld [vmem:[%s196 + $0x40] sm:$0xff]
        %v209 = vld [vmem:[%s196 + $0x48] sm:$0xff]
        %v210 = vld [vmem:[%s196 + $0x50] sm:$0xff]
        %v211 = vld [vmem:[%s196 + $0x58] sm:$0xff]
        %v212 = vld [vmem:[%s196 + $0x60] sm:$0xff]
        %v213 = vld [vmem:[%s196 + $0x68] sm:$0xff]
        %v214 = vld [vmem:[%s196 + $0x70] sm:$0xff]
        %v215 = vld [vmem:[%s196 + $0x78] sm:$0xff]
        %v216 = vld [vmem:[%s196 + $0x80] sm:$0xff]
        %v217 = vld [vmem:[%s196 + $0x88] sm:$0xff]
        %v218 = vld [vmem:[%s196 + $0x90] sm:$0xff]
        %v219 = vld [vmem:[%s196 + $0x98] sm:$0xff]
        %v220 = vld [vmem:[%s196 + $0xa0] sm:$0xff]
        %v221 = vld [vmem:[%s196 + $0xa8] sm:$0xff]
        %v222 = vld [vmem:[%s196 + $0xb0] sm:$0xff]
        %v223 = vld [vmem:[%s196 + $0xb8] sm:$0xff]
        %v224 = vld [vmem:[%s196 + $0xc0] sm:$0xff]
        %v225 = vld [vmem:[%s196 + $0xc8] sm:$0xff]
        %v226 = vld [vmem:[%s196 + $0xd0] sm:$0xff]
        %v227 = vld [vmem:[%s196 + $0xd8] sm:$0xff]
        %v228 = vld [vmem:[%s196 + $0xe0] sm:$0xff]
        %v229 = vld [vmem:[%s196 + $0xe8] sm:$0xff]
        %v230 = vld [vmem:[%s196 + $0xf0] sm:$0xff]
        %v231 = vld [vmem:[%s196 + $0xf8] sm:$0xff]
        %v232 = vld [vmem:[%s196 + $0x100] sm:$0xff]
        %v233 = vld [vmem:[%s196 + $0x108] sm:$0xff]
        %v234 = vld [vmem:[%s196 + $0x110] sm:$0xff]
        %v235 = vld [vmem:[%s196 + $0x118] sm:$0xff]
        %v236 = vld [vmem:[%s196 + $0x120] sm:$0xff]
        %v237 = vld [vmem:[%s196 + $0x128] sm:$0xff]
        %v238 = vld [vmem:[%s196 + $0x130] sm:$0xff]
        %v239 = vld [vmem:[%s196 + $0x138] sm:$0xff]
        %v240 = vld [vmem:[%s196 + $0x140] sm:$0xff]
        %v241 = vld [vmem:[%s196 + $0x148] sm:$0xff]
        %v242 = vld [vmem:[%s196 + $0x150] sm:$0xff]
        %v243 = vld [vmem:[%s196 + $0x158] sm:$0xff]
        %v244 = vld [vmem:[%s196 + $0x160] sm:$0xff]
        %v245 = vld [vmem:[%s196 + $0x168] sm:$0xff]
        %v246 = vld [vmem:[%s196 + $0x170] sm:$0xff]
        %v247 = vld [vmem:[%s196 + $0x178] sm:$0xff]
        %v248 = vld [vmem:[%s196 + $0x180] sm:$0xff]
        %v249 = vld [vmem:[%s196 + $0x188] sm:$0xff]
        %v250 = vld [vmem:[%s196 + $0x190] sm:$0xff]
        %v251 = vld [vmem:[%s196 + $0x198] sm:$0xff]
        %v252 = vld [vmem:[%s196 + $0x1a0] sm:$0xff]
        %v253 = vld [vmem:[%s196 + $0x1a8] sm:$0xff]
        %v254 = vld [vmem:[%s196 + $0x1b0] sm:$0xff]
        %v255 = vld [vmem:[%s196 + $0x1b8] sm:$0xff]
        %v256 = vld [vmem:[%s196 + $0x1c0] sm:$0xff]
        %v257 = vld [vmem:[%s196 + $0x1c8] sm:$0xff]
        %v258 = vld [vmem:[%s196 + $0x1d0] sm:$0xff]
        %v259 = vld [vmem:[%s196 + $0x1d8] sm:$0xff]
        %v260 = vld [vmem:[%s196 + $0x1e0] sm:$0xff]
        %v261 = vld [vmem:[%s196 + $0x1e8] sm:$0xff]
        %v262 = vld [vmem:[%s196 + $0x1f0] sm:$0xff]
        %v263 = vld [vmem:[%s196 + $0x1f8] sm:$0xff]
        %v264 = vpack.c.bf16 %v201, %v200
        %v265 = vpack.c.bf16 %v203, %v202
        %v266 = vpack.c.bf16 %v205, %v204
        %v267 = vpack.c.bf16 %v207, %v206
        %v268 = vpack.c.bf16 %v209, %v208
        %v269 = vpack.c.bf16 %v211, %v210
        %v270 = vpack.c.bf16 %v213, %v212
        %v271 = vpack.c.bf16 %v215, %v214
        %v272 = vpack.c.bf16 %v217, %v216
        %v273 = vpack.c.bf16 %v219, %v218
        %v274 = vpack.c.bf16 %v221, %v220
        %v275 = vpack.c.bf16 %v223, %v222
        %v276 = vpack.c.bf16 %v225, %v224
        %v277 = vpack.c.bf16 %v227, %v226
        %v278 = vpack.c.bf16 %v229, %v228
        %v279 = vpack.c.bf16 %v231, %v230
        %v280 = vpack.c.bf16 %v233, %v232
        %v281 = vpack.c.bf16 %v235, %v234
        %v282 = vpack.c.bf16 %v237, %v236
        %v283 = vpack.c.bf16 %v239, %v238
        %v284 = vpack.c.bf16 %v241, %v240
        %v285 = vpack.c.bf16 %v243, %v242
        %v286 = vpack.c.bf16 %v245, %v244
        %v287 = vpack.c.bf16 %v247, %v246
        %v288 = vpack.c.bf16 %v249, %v248
        %v289 = vpack.c.bf16 %v251, %v250
        %v290 = vpack.c.bf16 %v253, %v252
        %v291 = vpack.c.bf16 %v255, %v254
        %v292 = vpack.c.bf16 %v257, %v256
        %v293 = vpack.c.bf16 %v259, %v258
        %v294 = vpack.c.bf16 %v261, %v260
        %v295 = vpack.c.bf16 %v263, %v262
        %v296 = vld [vmem:[%s1] sm:$0xf]
        %v297 = vld [vmem:[%s1 + $0x4] sm:$0xf]
        %v298 = vld [vmem:[%s1 + $0x8] sm:$0xf]
        %v299 = vld [vmem:[%s1 + $0xc] sm:$0xf]
        %v304 = vunpack.c.l.b16 %v296
        %v305 = vunpack.c.l.b16 %v297
        %v306 = vunpack.c.l.b16 %v298
        %v307 = vunpack.c.l.b16 %v299
        %v308 = vpack.c.b16 %v305, %v304
        %v309 = vpack.c.b16 %v307, %v306
        %vm312 = vcmask 261120
        %v314 = vsel %vm312, %v264, 0
        %v317 = vsel %vm312, %v265, 0
        %v320 = vsel %vm312, %v266, 0
        %v323 = vsel %vm312, %v267, 0
        %v326 = vsel %vm312, %v268, 0
        %v329 = vsel %vm312, %v269, 0
        %v332 = vsel %vm312, %v270, 0
        %v335 = vsel %vm312, %v271, 0
        %v338 = vsel %vm312, %v272, 0
        %v341 = vsel %vm312, %v273, 0
        %v344 = vsel %vm312, %v274, 0
        %v347 = vsel %vm312, %v275, 0
        %v350 = vsel %vm312, %v276, 0
        %v353 = vsel %vm312, %v277, 0
        %v356 = vsel %vm312, %v278, 0
        %v359 = vsel %vm312, %v279, 0
        %v362 = vsel %vm312, %v280, 0
        %v365 = vsel %vm312, %v281, 0
        %v368 = vsel %vm312, %v282, 0
        %v371 = vsel %vm312, %v283, 0
        %v374 = vsel %vm312, %v284, 0
        %v377 = vsel %vm312, %v285, 0
        %v380 = vsel %vm312, %v286, 0
        %v383 = vsel %vm312, %v287, 0
        %v386 = vsel %vm312, %v288, 0
        %v389 = vsel %vm312, %v289, 0
        %v392 = vsel %vm312, %v290, 0
        %v395 = vsel %vm312, %v291, 0
        %v398 = vsel %vm312, %v292, 0
        %v401 = vsel %vm312, %v293, 0
        %v404 = vsel %vm312, %v294, 0
        %v407 = vsel %vm312, %v295, 0
        %409 = vmatprep.subr.bf16.mxu0 0
        %410 = vmatpush1.bf16.msra.mxu0 %v308
        %411 = vmatprep.subr.bf16.mxu0 0
        %412 = vmatpush1.bf16.msra.mxu0 %v309
        %413 = vmatprep.subr.bf16.mxu0 0
        %414 = vmatpush1.bf16.msra.mxu0 0
        %415 = vmatprep.subr.bf16.mxu0 0
        %416 = vmatpush1.bf16.msra.mxu0 0
        %417 = vmatprep.subr.bf16.mxu0 0
        %418 = vmatpush1.bf16.msra.mxu0 0
        %419 = vmatprep.subr.bf16.mxu0 0
        %420 = vmatpush1.bf16.msra.mxu0 0
        %421 = vmatprep.subr.bf16.mxu0 0
        %422 = vmatpush1.bf16.msra.mxu0 0
        %423 = vmatprep.subr.bf16.mxu0 0
        %424 = vmatpush1.bf16.msra.mxu0 0
        %425 = vmatprep.subr.bf16.mxu0 0
        %426 = vmatpush1.bf16.msra.mxu0 0
        %427 = vmatprep.subr.bf16.mxu0 0
        %428 = vmatpush1.bf16.msra.mxu0 0
        %429 = vmatprep.subr.bf16.mxu0 0
        %430 = vmatpush1.bf16.msra.mxu0 0
        %431 = vmatprep.subr.bf16.mxu0 0
        %432 = vmatpush1.bf16.msra.mxu0 0
        %433 = vmatprep.subr.bf16.mxu0 0
        %434 = vmatpush1.bf16.msra.mxu0 0
        %435 = vmatprep.subr.bf16.mxu0 0
        %436 = vmatpush1.bf16.msra.mxu0 0
        %437 = vmatprep.subr.bf16.mxu0 0
        %438 = vmatpush1.bf16.msra.mxu0 0
        %439 = vmatprep.subr.bf16.mxu0 0
        %440 = vmatpush1.bf16.msra.mxu0 0
        %441 = vmatprep.mubr.bf16.mxu0 0
        %442 = vmatmul.mubr.bf16.gmra.mrb[0].mxu0 %v314
        %v443 = vpop.f32.mrb[0].mxu0
        %v444 = vadd.f32 0.0, %v443
        %v445 = vpop.f32.mrb[0].mxu0
        %v446 = vpop.f32.mrb[0].mxu0
        %v447 = vadd.f32 0.0, %v446
        %v448 = vpop.f32.mrb[0].mxu0
        %449 = vmatprep.mubr.bf16.mxu0 0
        %450 = vmatmul.mubr.bf16.gmra.mrb[0].mxu0 %v317
        %v451 = vpop.f32.mrb[0].mxu0
        %v452 = vadd.f32 0.0, %v451
        %v453 = vpop.f32.mrb[0].mxu0
        %v454 = vpop.f32.mrb[0].mxu0
        %v455 = vadd.f32 0.0, %v454
        %v456 = vpop.f32.mrb[0].mxu0
        %457 = vmatprep.mubr.bf16.mxu0 0
        %458 = vmatmul.mubr.bf16.gmra.mrb[0].mxu0 %v320
        %v459 = vpop.f32.mrb[0].mxu0
        %v460 = vadd.f32 0.0, %v459
        %v461 = vpop.f32.mrb[0].mxu0
        %v462 = vpop.f32.mrb[0].mxu0
        %v463 = vadd.f32 0.0, %v462
        %v464 = vpop.f32.mrb[0].mxu0
        %465 = vmatprep.mubr.bf16.mxu0 0
        %466 = vmatmul.mubr.bf16.gmra.mrb[0].mxu0 %v323
        %v467 = vpop.f32.mrb[0].mxu0
        %v468 = vadd.f32 0.0, %v467
        %v469 = vpop.f32.mrb[0].mxu0
        %v470 = vpop.f32.mrb[0].mxu0
        %v471 = vadd.f32 0.0, %v470
        %v472 = vpop.f32.mrb[0].mxu0
        %473 = vmatprep.mubr.bf16.mxu0 0
        %474 = vmatmul.mubr.bf16.gmra.mrb[0].mxu0 %v326
        %v475 = vpop.f32.mrb[0].mxu0
        %v476 = vadd.f32 0.0, %v475
        %v477 = vpop.f32.mrb[0].mxu0
        %v478 = vpop.f32.mrb[0].mxu0
        %v479 = vadd.f32 0.0, %v478
        %v480 = vpop.f32.mrb[0].mxu0
        %481 = vmatprep.mubr.bf16.mxu0 0
        %482 = vmatmul.mubr.bf16.gmra.mrb[0].mxu0 %v329
        %v483 = vpop.f32.mrb[0].mxu0
        %v484 = vadd.f32 0.0, %v483
        %v485 = vpop.f32.mrb[0].mxu0
        %v486 = vpop.f32.mrb[0].mxu0
        %v487 = vadd.f32 0.0, %v486
        %v488 = vpop.f32.mrb[0].mxu0
        %489 = vmatprep.mubr.bf16.mxu0 0
        %490 = vmatmul.mubr.bf16.gmra.mrb[0].mxu0 %v332
        %v491 = vpop.f32.mrb[0].mxu0
        %v492 = vadd.f32 0.0, %v491
        %v493 = vpop.f32.mrb[0].mxu0
        %v494 = vpop.f32.mrb[0].mxu0
        %v495 = vadd.f32 0.0, %v494
        %v496 = vpop.f32.mrb[0].mxu0
        %497 = vmatprep.mubr.bf16.mxu0 0
        %498 = vmatmul.mubr.bf16.gmra.mrb[0].mxu0 %v335
        %v499 = vpop.f32.mrb[0].mxu0
        %v500 = vadd.f32 0.0, %v499
        %v501 = vpop.f32.mrb[0].mxu0
        %v502 = vpop.f32.mrb[0].mxu0
        %v503 = vadd.f32 0.0, %v502
        %v504 = vpop.f32.mrb[0].mxu0
        %505 = vmatprep.mubr.bf16.mxu0 0
        %506 = vmatmul.mubr.bf16.gmra.mrb[0].mxu0 %v338
        %v507 = vpop.f32.mrb[0].mxu0
        %v508 = vadd.f32 0.0, %v507
        %v509 = vpop.f32.mrb[0].mxu0
        %v510 = vpop.f32.mrb[0].mxu0
        %v511 = vadd.f32 0.0, %v510
        %v512 = vpop.f32.mrb[0].mxu0
        %513 = vmatprep.mubr.bf16.mxu0 0
        %514 = vmatmul.mubr.bf16.gmra.mrb[0].mxu0 %v341
        %v515 = vpop.f32.mrb[0].mxu0
        %v516 = vadd.f32 0.0, %v515
        %v517 = vpop.f32.mrb[0].mxu0
        %v518 = vpop.f32.mrb[0].mxu0
        %v519 = vadd.f32 0.0, %v518
        %v520 = vpop.f32.mrb[0].mxu0
        %521 = vmatprep.mubr.bf16.mxu0 0
        %522 = vmatmul.mubr.bf16.gmra.mrb[0].mxu0 %v344
        %v523 = vpop.f32.mrb[0].mxu0
        %v524 = vadd.f32 0.0, %v523
        %v525 = vpop.f32.mrb[0].mxu0
        %v526 = vpop.f32.mrb[0].mxu0
        %v527 = vadd.f32 0.0, %v526
        %v528 = vpop.f32.mrb[0].mxu0
        %529 = vmatprep.mubr.bf16.mxu0 0
        %530 = vmatmul.mubr.bf16.gmra.mrb[0].mxu0 %v347
        %v531 = vpop.f32.mrb[0].mxu0
        %v532 = vadd.f32 0.0, %v531
        %v533 = vpop.f32.mrb[0].mxu0
        %v534 = vpop.f32.mrb[0].mxu0
        %v535 = vadd.f32 0.0, %v534
        %v536 = vpop.f32.mrb[0].mxu0
        %537 = vmatprep.mubr.bf16.mxu0 0
        %538 = vmatmul.mubr.bf16.gmra.mrb[0].mxu0 %v350
        %v539 = vpop.f32.mrb[0].mxu0
        %v540 = vadd.f32 0.0, %v539
        %v541 = vpop.f32.mrb[0].mxu0
        %v542 = vpop.f32.mrb[0].mxu0
        %v543 = vadd.f32 0.0, %v542
        %v544 = vpop.f32.mrb[0].mxu0
        %545 = vmatprep.mubr.bf16.mxu0 0
        %546 = vmatmul.mubr.bf16.gmra.mrb[0].mxu0 %v353
        %v547 = vpop.f32.mrb[0].mxu0
        %v548 = vadd.f32 0.0, %v547
        %v549 = vpop.f32.mrb[0].mxu0
        %v550 = vpop.f32.mrb[0].mxu0
        %v551 = vadd.f32 0.0, %v550
        %v552 = vpop.f32.mrb[0].mxu0
        %553 = vmatprep.mubr.bf16.mxu0 0
        %554 = vmatmul.mubr.bf16.gmra.mrb[0].mxu0 %v356
        %v555 = vpop.f32.mrb[0].mxu0
        %v556 = vadd.f32 0.0, %v555
        %v557 = vpop.f32.mrb[0].mxu0
        %v558 = vpop.f32.mrb[0].mxu0
        %v559 = vadd.f32 0.0, %v558
        %v560 = vpop.f32.mrb[0].mxu0
        %561 = vmatprep.mubr.bf16.mxu0 0
        %562 = vmatmul.mubr.bf16.gmra.mrb[0].mxu0 %v359
        %v563 = vpop.f32.mrb[0].mxu0
        %v564 = vadd.f32 0.0, %v563
        %v565 = vpop.f32.mrb[0].mxu0
        %v566 = vpop.f32.mrb[0].mxu0
        %v567 = vadd.f32 0.0, %v566
        %v568 = vpop.f32.mrb[0].mxu0
        %569 = vmatprep.mubr.bf16.mxu0 0
        %570 = vmatmul.mubr.bf16.gmra.mrb[0].mxu0 %v362
        %v571 = vpop.f32.mrb[0].mxu0
        %v572 = vadd.f32 0.0, %v571
        %v573 = vpop.f32.mrb[0].mxu0
        %v574 = vpop.f32.mrb[0].mxu0
        %v575 = vadd.f32 0.0, %v574
        %v576 = vpop.f32.mrb[0].mxu0
        %577 = vmatprep.mubr.bf16.mxu0 0
        %578 = vmatmul.mubr.bf16.gmra.mrb[0].mxu0 %v365
        %v579 = vpop.f32.mrb[0].mxu0
        %v580 = vadd.f32 0.0, %v579
        %v581 = vpop.f32.mrb[0].mxu0
        %v582 = vpop.f32.mrb[0].mxu0
        %v583 = vadd.f32 0.0, %v582
        %v584 = vpop.f32.mrb[0].mxu0
        %585 = vmatprep.mubr.bf16.mxu0 0
        %586 = vmatmul.mubr.bf16.gmra.mrb[0].mxu0 %v368
        %v587 = vpop.f32.mrb[0].mxu0
        %v588 = vadd.f32 0.0, %v587
        %v589 = vpop.f32.mrb[0].mxu0
        %v590 = vpop.f32.mrb[0].mxu0
        %v591 = vadd.f32 0.0, %v590
        %v592 = vpop.f32.mrb[0].mxu0
        %593 = vmatprep.mubr.bf16.mxu0 0
        %594 = vmatmul.mubr.bf16.gmra.mrb[0].mxu0 %v371
        %v595 = vpop.f32.mrb[0].mxu0
        %v596 = vadd.f32 0.0, %v595
        %v597 = vpop.f32.mrb[0].mxu0
        %v598 = vpop.f32.mrb[0].mxu0
        %v599 = vadd.f32 0.0, %v598
        %v600 = vpop.f32.mrb[0].mxu0
        %601 = vmatprep.mubr.bf16.mxu0 0
        %602 = vmatmul.mubr.bf16.gmra.mrb[0].mxu0 %v374
        %v603 = vpop.f32.mrb[0].mxu0
        %v604 = vadd.f32 0.0, %v603
        %v605 = vpop.f32.mrb[0].mxu0
        %v606 = vpop.f32.mrb[0].mxu0
        %v607 = vadd.f32 0.0, %v606
        %v608 = vpop.f32.mrb[0].mxu0
        %609 = vmatprep.mubr.bf16.mxu0 0
        %610 = vmatmul.mubr.bf16.gmra.mrb[0].mxu0 %v377
        %v611 = vpop.f32.mrb[0].mxu0
        %v612 = vadd.f32 0.0, %v611
        %v613 = vpop.f32.mrb[0].mxu0
        %v614 = vpop.f32.mrb[0].mxu0
        %v615 = vadd.f32 0.0, %v614
        %v616 = vpop.f32.mrb[0].mxu0
        %617 = vmatprep.mubr.bf16.mxu0 0
        %618 = vmatmul.mubr.bf16.gmra.mrb[0].mxu0 %v380
        %v619 = vpop.f32.mrb[0].mxu0
        %v620 = vadd.f32 0.0, %v619
        %v621 = vpop.f32.mrb[0].mxu0
        %v622 = vpop.f32.mrb[0].mxu0
        %v623 = vadd.f32 0.0, %v622
        %v624 = vpop.f32.mrb[0].mxu0
        %625 = vmatprep.mubr.bf16.mxu0 0
        %626 = vmatmul.mubr.bf16.gmra.mrb[0].mxu0 %v383
        %v627 = vpop.f32.mrb[0].mxu0
        %v628 = vadd.f32 0.0, %v627
        %v629 = vpop.f32.mrb[0].mxu0
        %v630 = vpop.f32.mrb[0].mxu0
        %v631 = vadd.f32 0.0, %v630
        %v632 = vpop.f32.mrb[0].mxu0
        %633 = vmatprep.mubr.bf16.mxu0 0
        %634 = vmatmul.mubr.bf16.gmra.mrb[0].mxu0 %v386
        %v635 = vpop.f32.mrb[0].mxu0
        %v636 = vadd.f32 0.0, %v635
        %v637 = vpop.f32.mrb[0].mxu0
        %v638 = vpop.f32.mrb[0].mxu0
        %v639 = vadd.f32 0.0, %v638
        %v640 = vpop.f32.mrb[0].mxu0
        %641 = vmatprep.mubr.bf16.mxu0 0
        %642 = vmatmul.mubr.bf16.gmra.mrb[0].mxu0 %v389
        %v643 = vpop.f32.mrb[0].mxu0
        %v644 = vadd.f32 0.0, %v643
        %v645 = vpop.f32.mrb[0].mxu0
        %v646 = vpop.f32.mrb[0].mxu0
        %v647 = vadd.f32 0.0, %v646
        %v648 = vpop.f32.mrb[0].mxu0
        %649 = vmatprep.mubr.bf16.mxu0 0
        %650 = vmatmul.mubr.bf16.gmra.mrb[0].mxu0 %v392
        %v651 = vpop.f32.mrb[0].mxu0
        %v652 = vadd.f32 0.0, %v651
        %v653 = vpop.f32.mrb[0].mxu0
        %v654 = vpop.f32.mrb[0].mxu0
        %v655 = vadd.f32 0.0, %v654
        %v656 = vpop.f32.mrb[0].mxu0
        %657 = vmatprep.mubr.bf16.mxu0 0
        %658 = vmatmul.mubr.bf16.gmra.mrb[0].mxu0 %v395
        %v659 = vpop.f32.mrb[0].mxu0
        %v660 = vadd.f32 0.0, %v659
        %v661 = vpop.f32.mrb[0].mxu0
        %v662 = vpop.f32.mrb[0].mxu0
        %v663 = vadd.f32 0.0, %v662
        %v664 = vpop.f32.mrb[0].mxu0
        %665 = vmatprep.mubr.bf16.mxu0 0
        %666 = vmatmul.mubr.bf16.gmra.mrb[0].mxu0 %v398
        %v667 = vpop.f32.mrb[0].mxu0
        %v668 = vadd.f32 0.0, %v667
        %v669 = vpop.f32.mrb[0].mxu0
        %v670 = vpop.f32.mrb[0].mxu0
        %v671 = vadd.f32 0.0, %v670
        %v672 = vpop.f32.mrb[0].mxu0
        %673 = vmatprep.mubr.bf16.mxu0 0
        %674 = vmatmul.mubr.bf16.gmra.mrb[0].mxu0 %v401
        %v675 = vpop.f32.mrb[0].mxu0
        %v676 = vadd.f32 0.0, %v675
        %v677 = vpop.f32.mrb[0].mxu0
        %v678 = vpop.f32.mrb[0].mxu0
        %v679 = vadd.f32 0.0, %v678
        %v680 = vpop.f32.mrb[0].mxu0
        %681 = vmatprep.mubr.bf16.mxu0 0
        %682 = vmatmul.mubr.bf16.gmra.mrb[0].mxu0 %v404
        %v683 = vpop.f32.mrb[0].mxu0
        %v684 = vadd.f32 0.0, %v683
        %v685 = vpop.f32.mrb[0].mxu0
        %v686 = vpop.f32.mrb[0].mxu0
        %v687 = vadd.f32 0.0, %v686
        %v688 = vpop.f32.mrb[0].mxu0
        %689 = vmatprep.mubr.bf16.mxu0 0
        %690 = vmatmul.mubr.bf16.gmra.mrb[0].mxu0 %v407
        %v691 = vpop.f32.mrb[0].mxu0
        %v692 = vadd.f32 0.0, %v691
        %v693 = vpop.f32.mrb[0].mxu0
        %v694 = vpop.f32.mrb[0].mxu0
        %v695 = vadd.f32 0.0, %v694
        %v696 = vpop.f32.mrb[0].mxu0
        %697 = vdwg.mxu0
        %v698 = vld [vmem:[%s2] sm:$0x1]
        %v700 = vlaneseq
        %v701 = vshrl.u32 %v700, 7
        %v702 = vsub.s32 0, %v701
        %v703 = vrot.slane %v698, %v702
        %v705 = vmul.f32 %v444, %v703
        %v706 = vmul.f32 %v447, %v703
        %v707 = vmul.f32 %v452, %v703
        %v708 = vmul.f32 %v455, %v703
        %v709 = vmul.f32 %v460, %v703
        %v710 = vmul.f32 %v463, %v703
        %v711 = vmul.f32 %v468, %v703
        %v712 = vmul.f32 %v471, %v703
        %v713 = vmul.f32 %v476, %v703
        %v714 = vmul.f32 %v479, %v703
        %v715 = vmul.f32 %v484, %v703
        %v716 = vmul.f32 %v487, %v703
        %v717 = vmul.f32 %v492, %v703
        %v718 = vmul.f32 %v495, %v703
        %v719 = vmul.f32 %v500, %v703
        %v720 = vmul.f32 %v503, %v703
        %v721 = vmul.f32 %v508, %v703
        %v722 = vmul.f32 %v511, %v703
        %v723 = vmul.f32 %v516, %v703
        %v724 = vmul.f32 %v519, %v703
        %v725 = vmul.f32 %v524, %v703
        %v726 = vmul.f32 %v527, %v703
        %v727 = vmul.f32 %v532, %v703
        %v728 = vmul.f32 %v535, %v703
        %v729 = vmul.f32 %v540, %v703
        %v730 = vmul.f32 %v543, %v703
        %v731 = vmul.f32 %v548, %v703
        %v732 = vmul.f32 %v551, %v703
        %v733 = vmul.f32 %v556, %v703
        %v734 = vmul.f32 %v559, %v703
        %v735 = vmul.f32 %v564, %v703
        %v736 = vmul.f32 %v567, %v703
        %v737 = vmul.f32 %v572, %v703
        %v738 = vmul.f32 %v575, %v703
        %v739 = vmul.f32 %v580, %v703
        %v740 = vmul.f32 %v583, %v703
        %v741 = vmul.f32 %v588, %v703
        %v742 = vmul.f32 %v591, %v703
        %v743 = vmul.f32 %v596, %v703
        %v744 = vmul.f32 %v599, %v703
        %v745 = vmul.f32 %v604, %v703
        %v746 = vmul.f32 %v607, %v703
        %v747 = vmul.f32 %v612, %v703
        %v748 = vmul.f32 %v615, %v703
        %v749 = vmul.f32 %v620, %v703
        %v750 = vmul.f32 %v623, %v703
        %v751 = vmul.f32 %v628, %v703
        %v752 = vmul.f32 %v631, %v703
        %v753 = vmul.f32 %v636, %v703
        %v754 = vmul.f32 %v639, %v703
        %v755 = vmul.f32 %v644, %v703
        %v756 = vmul.f32 %v647, %v703
        %v757 = vmul.f32 %v652, %v703
        %v758 = vmul.f32 %v655, %v703
        %v759 = vmul.f32 %v660, %v703
        %v760 = vmul.f32 %v663, %v703
        %v761 = vmul.f32 %v668, %v703
        %v762 = vmul.f32 %v671, %v703
        %v763 = vmul.f32 %v676, %v703
        %v764 = vmul.f32 %v679, %v703
        %v765 = vmul.f32 %v684, %v703
        %v766 = vmul.f32 %v687, %v703
        %v767 = vmul.f32 %v692, %v703
        %v768 = vmul.f32 %v695, %v703
        %v769 = vld [vmem:[%s3] sm:$0x1]
        %v771 = vlaneseq
        %v772 = vshrl.u32 %v771, 7
        %v773 = vsub.s32 0, %v772
        %v774 = vrot.slane %v769, %v773
        %v776 = vadd.f32 %v705, %v774
        %v777 = vadd.f32 %v706, %v774
        %v778 = vadd.f32 %v707, %v774
        %v779 = vadd.f32 %v708, %v774
        %v780 = vadd.f32 %v709, %v774
        %v781 = vadd.f32 %v710, %v774
        %v782 = vadd.f32 %v711, %v774
        %v783 = vadd.f32 %v712, %v774
        %v784 = vadd.f32 %v713, %v774
        %v785 = vadd.f32 %v714, %v774
        %v786 = vadd.f32 %v715, %v774
        %v787 = vadd.f32 %v716, %v774
        %v788 = vadd.f32 %v717, %v774
        %v789 = vadd.f32 %v718, %v774
        %v790 = vadd.f32 %v719, %v774
        %v791 = vadd.f32 %v720, %v774
        %v792 = vadd.f32 %v721, %v774
        %v793 = vadd.f32 %v722, %v774
        %v794 = vadd.f32 %v723, %v774
        %v795 = vadd.f32 %v724, %v774
        %v796 = vadd.f32 %v725, %v774
        %v797 = vadd.f32 %v726, %v774
        %v798 = vadd.f32 %v727, %v774
        %v799 = vadd.f32 %v728, %v774
        %v800 = vadd.f32 %v729, %v774
        %v801 = vadd.f32 %v730, %v774
        %v802 = vadd.f32 %v731, %v774
        %v803 = vadd.f32 %v732, %v774
        %v804 = vadd.f32 %v733, %v774
        %v805 = vadd.f32 %v734, %v774
        %v806 = vadd.f32 %v735, %v774
        %v807 = vadd.f32 %v736, %v774
        %v808 = vadd.f32 %v737, %v774
        %v809 = vadd.f32 %v738, %v774
        %v810 = vadd.f32 %v739, %v774
        %v811 = vadd.f32 %v740, %v774
        %v812 = vadd.f32 %v741, %v774
        %v813 = vadd.f32 %v742, %v774
        %v814 = vadd.f32 %v743, %v774
        %v815 = vadd.f32 %v744, %v774
        %v816 = vadd.f32 %v745, %v774
        %v817 = vadd.f32 %v746, %v774
        %v818 = vadd.f32 %v747, %v774
        %v819 = vadd.f32 %v748, %v774
        %v820 = vadd.f32 %v749, %v774
        %v821 = vadd.f32 %v750, %v774
        %v822 = vadd.f32 %v751, %v774
        %v823 = vadd.f32 %v752, %v774
        %v824 = vadd.f32 %v753, %v774
        %v825 = vadd.f32 %v754, %v774
        %v826 = vadd.f32 %v755, %v774
        %v827 = vadd.f32 %v756, %v774
        %v828 = vadd.f32 %v757, %v774
        %v829 = vadd.f32 %v758, %v774
        %v830 = vadd.f32 %v759, %v774
        %v831 = vadd.f32 %v760, %v774
        %v832 = vadd.f32 %v761, %v774
        %v833 = vadd.f32 %v762, %v774
        %v834 = vadd.f32 %v763, %v774
        %v835 = vadd.f32 %v764, %v774
        %v836 = vadd.f32 %v765, %v774
        %v837 = vadd.f32 %v766, %v774
        %v838 = vadd.f32 %v767, %v774
        %v839 = vadd.f32 %v768, %v774
        %v840 = vxor.u32 %v776, 2147483648
        %v841 = vxor.u32 %v777, 2147483648
        %v842 = vxor.u32 %v778, 2147483648
        %v843 = vxor.u32 %v779, 2147483648
        %v844 = vxor.u32 %v780, 2147483648
        %v845 = vxor.u32 %v781, 2147483648
        %v846 = vxor.u32 %v782, 2147483648
        %v847 = vxor.u32 %v783, 2147483648
        %v848 = vxor.u32 %v784, 2147483648
        %v849 = vxor.u32 %v785, 2147483648
        %v850 = vxor.u32 %v786, 2147483648
        %v851 = vxor.u32 %v787, 2147483648
        %v852 = vxor.u32 %v788, 2147483648
        %v853 = vxor.u32 %v789, 2147483648
        %v854 = vxor.u32 %v790, 2147483648
        %v855 = vxor.u32 %v791, 2147483648
        %v856 = vxor.u32 %v792, 2147483648
        %v857 = vxor.u32 %v793, 2147483648
        %v858 = vxor.u32 %v794, 2147483648
        %v859 = vxor.u32 %v795, 2147483648
        %v860 = vxor.u32 %v796, 2147483648
        %v861 = vxor.u32 %v797, 2147483648
        %v862 = vxor.u32 %v798, 2147483648
        %v863 = vxor.u32 %v799, 2147483648
        %v864 = vxor.u32 %v800, 2147483648
        %v865 = vxor.u32 %v801, 2147483648
        %v866 = vxor.u32 %v802, 2147483648
        %v867 = vxor.u32 %v803, 2147483648
        %v868 = vxor.u32 %v804, 2147483648
        %v869 = vxor.u32 %v805, 2147483648
        %v870 = vxor.u32 %v806, 2147483648
        %v871 = vxor.u32 %v807, 2147483648
        %v872 = vxor.u32 %v808, 2147483648
        %v873 = vxor.u32 %v809, 2147483648
        %v874 = vxor.u32 %v810, 2147483648
        %v875 = vxor.u32 %v811, 2147483648
        %v876 = vxor.u32 %v812, 2147483648
        %v877 = vxor.u32 %v813, 2147483648
        %v878 = vxor.u32 %v814, 2147483648
        %v879 = vxor.u32 %v815, 2147483648
        %v880 = vxor.u32 %v816, 2147483648
        %v881 = vxor.u32 %v817, 2147483648
        %v882 = vxor.u32 %v818, 2147483648
        %v883 = vxor.u32 %v819, 2147483648
        %v884 = vxor.u32 %v820, 2147483648
        %v885 = vxor.u32 %v821, 2147483648
        %v886 = vxor.u32 %v822, 2147483648
        %v887 = vxor.u32 %v823, 2147483648
        %v888 = vxor.u32 %v824, 2147483648
        %v889 = vxor.u32 %v825, 2147483648
        %v890 = vxor.u32 %v826, 2147483648
        %v891 = vxor.u32 %v827, 2147483648
        %v892 = vxor.u32 %v828, 2147483648
        %v893 = vxor.u32 %v829, 2147483648
        %v894 = vxor.u32 %v830, 2147483648
        %v895 = vxor.u32 %v831, 2147483648
        %v896 = vxor.u32 %v832, 2147483648
        %v897 = vxor.u32 %v833, 2147483648
        %v898 = vxor.u32 %v834, 2147483648
        %v899 = vxor.u32 %v835, 2147483648
        %v900 = vxor.u32 %v836, 2147483648
        %v901 = vxor.u32 %v837, 2147483648
        %v902 = vxor.u32 %v838, 2147483648
        %v903 = vxor.u32 %v839, 2147483648
        %v904 = vmul.f32 %v840, 1.442695
        %v905 = vpow.pop %v904
        %v906 = vmul.f32 %v841, 1.442695
        %v907 = vpow.pop %v906
        %v908 = vmul.f32 %v842, 1.442695
        %v909 = vpow.pop %v908
        %v910 = vmul.f32 %v843, 1.442695
        %v911 = vpow.pop %v910
        %v912 = vmul.f32 %v844, 1.442695
        %v913 = vpow.pop %v912
        %v914 = vmul.f32 %v845, 1.442695
        %v915 = vpow.pop %v914
        %v916 = vmul.f32 %v846, 1.442695
        %v917 = vpow.pop %v916
        %v918 = vmul.f32 %v847, 1.442695
        %v919 = vpow.pop %v918
        %v920 = vmul.f32 %v848, 1.442695
        %v921 = vpow.pop %v920
        %v922 = vmul.f32 %v849, 1.442695
        %v923 = vpow.pop %v922
        %v924 = vmul.f32 %v850, 1.442695
        %v925 = vpow.pop %v924
        %v926 = vmul.f32 %v851, 1.442695
        %v927 = vpow.pop %v926
        %v928 = vmul.f32 %v852, 1.442695
        %v929 = vpow.pop %v928
        %v930 = vmul.f32 %v853, 1.442695
        %v931 = vpow.pop %v930
        %v932 = vmul.f32 %v854, 1.442695
        %v933 = vpow.pop %v932
        %v934 = vmul.f32 %v855, 1.442695
        %v935 = vpow.pop %v934
        %v936 = vmul.f32 %v856, 1.442695
        %v937 = vpow.pop %v936
        %v938 = vmul.f32 %v857, 1.442695
        %v939 = vpow.pop %v938
        %v940 = vmul.f32 %v858, 1.442695
        %v941 = vpow.pop %v940
        %v942 = vmul.f32 %v859, 1.442695
        %v943 = vpow.pop %v942
        %v944 = vmul.f32 %v860, 1.442695
        %v945 = vpow.pop %v944
        %v946 = vmul.f32 %v861, 1.442695
        %v947 = vpow.pop %v946
        %v948 = vmul.f32 %v862, 1.442695
        %v949 = vpow.pop %v948
        %v950 = vmul.f32 %v863, 1.442695
        %v951 = vpow.pop %v950
        %v952 = vmul.f32 %v864, 1.442695
        %v953 = vpow.pop %v952
        %v954 = vmul.f32 %v865, 1.442695
        %v955 = vpow.pop %v954
        %v956 = vmul.f32 %v866, 1.442695
        %v957 = vpow.pop %v956
        %v958 = vmul.f32 %v867, 1.442695
        %v959 = vpow.pop %v958
        %v960 = vmul.f32 %v868, 1.442695
        %v961 = vpow.pop %v960
        %v962 = vmul.f32 %v869, 1.442695
        %v963 = vpow.pop %v962
        %v964 = vmul.f32 %v870, 1.442695
        %v965 = vpow.pop %v964
        %v966 = vmul.f32 %v871, 1.442695
        %v967 = vpow.pop %v966
        %v968 = vmul.f32 %v872, 1.442695
        %v969 = vpow.pop %v968
        %v970 = vmul.f32 %v873, 1.442695
        %v971 = vpow.pop %v970
        %v972 = vmul.f32 %v874, 1.442695
        %v973 = vpow.pop %v972
        %v974 = vmul.f32 %v875, 1.442695
        %v975 = vpow.pop %v974
        %v976 = vmul.f32 %v876, 1.442695
        %v977 = vpow.pop %v976
        %v978 = vmul.f32 %v877, 1.442695
        %v979 = vpow.pop %v978
        %v980 = vmul.f32 %v878, 1.442695
        %v981 = vpow.pop %v980
        %v982 = vmul.f32 %v879, 1.442695
        %v983 = vpow.pop %v982
        %v984 = vmul.f32 %v880, 1.442695
        %v985 = vpow.pop %v984
        %v986 = vmul.f32 %v881, 1.442695
        %v987 = vpow.pop %v986
        %v988 = vmul.f32 %v882, 1.442695
        %v989 = vpow.pop %v988
        %v990 = vmul.f32 %v883, 1.442695
        %v991 = vpow.pop %v990
        %v992 = vmul.f32 %v884, 1.442695
        %v993 = vpow.pop %v992
        %v994 = vmul.f32 %v885, 1.442695
        %v995 = vpow.pop %v994
        %v996 = vmul.f32 %v886, 1.442695
        %v997 = vpow.pop %v996
        %v998 = vmul.f32 %v887, 1.442695
        %v999 = vpow.pop %v998
        %v1000 = vmul.f32 %v888, 1.442695
        %v1001 = vpow.pop %v1000
        %v1002 = vmul.f32 %v889, 1.442695
        %v1003 = vpow.pop %v1002
        %v1004 = vmul.f32 %v890, 1.442695
        %v1005 = vpow.pop %v1004
        %v1006 = vmul.f32 %v891, 1.442695
        %v1007 = vpow.pop %v1006
        %v1008 = vmul.f32 %v892, 1.442695
        %v1009 = vpow.pop %v1008
        %v1010 = vmul.f32 %v893, 1.442695
        %v1011 = vpow.pop %v1010
        %v1012 = vmul.f32 %v894, 1.442695
        %v1013 = vpow.pop %v1012
        %v1014 = vmul.f32 %v895, 1.442695
        %v1015 = vpow.pop %v1014
        %v1016 = vmul.f32 %v896, 1.442695
        %v1017 = vpow.pop %v1016
        %v1018 = vmul.f32 %v897, 1.442695
        %v1019 = vpow.pop %v1018
        %v1020 = vmul.f32 %v898, 1.442695
        %v1021 = vpow.pop %v1020
        %v1022 = vmul.f32 %v899, 1.442695
        %v1023 = vpow.pop %v1022
        %v1024 = vmul.f32 %v900, 1.442695
        %v1025 = vpow.pop %v1024
        %v1026 = vmul.f32 %v901, 1.442695
        %v1027 = vpow.pop %v1026
        %v1028 = vmul.f32 %v902, 1.442695
        %v1029 = vpow.pop %v1028
        %v1030 = vmul.f32 %v903, 1.442695
        %v1031 = vpow.pop %v1030
        %v1032 = vadd.f32 %v905, 1.0
        %v1033 = vadd.f32 %v907, 1.0
        %v1034 = vadd.f32 %v909, 1.0
        %v1035 = vadd.f32 %v911, 1.0
        %v1036 = vadd.f32 %v913, 1.0
        %v1037 = vadd.f32 %v915, 1.0
        %v1038 = vadd.f32 %v917, 1.0
        %v1039 = vadd.f32 %v919, 1.0
        %v1040 = vadd.f32 %v921, 1.0
        %v1041 = vadd.f32 %v923, 1.0
        %v1042 = vadd.f32 %v925, 1.0
        %v1043 = vadd.f32 %v927, 1.0
        %v1044 = vadd.f32 %v929, 1.0
        %v1045 = vadd.f32 %v931, 1.0
        %v1046 = vadd.f32 %v933, 1.0
        %v1047 = vadd.f32 %v935, 1.0
        %v1048 = vadd.f32 %v937, 1.0
        %v1049 = vadd.f32 %v939, 1.0
        %v1050 = vadd.f32 %v941, 1.0
        %v1051 = vadd.f32 %v943, 1.0
        %v1052 = vadd.f32 %v945, 1.0
        %v1053 = vadd.f32 %v947, 1.0
        %v1054 = vadd.f32 %v949, 1.0
        %v1055 = vadd.f32 %v951, 1.0
        %v1056 = vadd.f32 %v953, 1.0
        %v1057 = vadd.f32 %v955, 1.0
        %v1058 = vadd.f32 %v957, 1.0
        %v1059 = vadd.f32 %v959, 1.0
        %v1060 = vadd.f32 %v961, 1.0
        %v1061 = vadd.f32 %v963, 1.0
        %v1062 = vadd.f32 %v965, 1.0
        %v1063 = vadd.f32 %v967, 1.0
        %v1064 = vadd.f32 %v969, 1.0
        %v1065 = vadd.f32 %v971, 1.0
        %v1066 = vadd.f32 %v973, 1.0
        %v1067 = vadd.f32 %v975, 1.0
        %v1068 = vadd.f32 %v977, 1.0
        %v1069 = vadd.f32 %v979, 1.0
        %v1070 = vadd.f32 %v981, 1.0
        %v1071 = vadd.f32 %v983, 1.0
        %v1072 = vadd.f32 %v985, 1.0
        %v1073 = vadd.f32 %v987, 1.0
        %v1074 = vadd.f32 %v989, 1.0
        %v1075 = vadd.f32 %v991, 1.0
        %v1076 = vadd.f32 %v993, 1.0
        %v1077 = vadd.f32 %v995, 1.0
        %v1078 = vadd.f32 %v997, 1.0
        %v1079 = vadd.f32 %v999, 1.0
        %v1080 = vadd.f32 %v1001, 1.0
        %v1081 = vadd.f32 %v1003, 1.0
        %v1082 = vadd.f32 %v1005, 1.0
        %v1083 = vadd.f32 %v1007, 1.0
        %v1084 = vadd.f32 %v1009, 1.0
        %v1085 = vadd.f32 %v1011, 1.0
        %v1086 = vadd.f32 %v1013, 1.0
        %v1087 = vadd.f32 %v1015, 1.0
        %v1088 = vadd.f32 %v1017, 1.0
        %v1089 = vadd.f32 %v1019, 1.0
        %v1090 = vadd.f32 %v1021, 1.0
        %v1091 = vadd.f32 %v1023, 1.0
        %v1092 = vadd.f32 %v1025, 1.0
        %v1093 = vadd.f32 %v1027, 1.0
        %v1094 = vadd.f32 %v1029, 1.0
        %v1095 = vadd.f32 %v1031, 1.0
        %v1096 = vrcp.pop %v1032
        %v1097 = vmul.f32 1.0, %v1096
        %v1098 = vrcp.pop %v1033
        %v1099 = vmul.f32 1.0, %v1098
        %v1100 = vrcp.pop %v1034
        %v1101 = vmul.f32 1.0, %v1100
        %v1102 = vrcp.pop %v1035
        %v1103 = vmul.f32 1.0, %v1102
        %v1104 = vrcp.pop %v1036
        %v1105 = vmul.f32 1.0, %v1104
        %v1106 = vrcp.pop %v1037
        %v1107 = vmul.f32 1.0, %v1106
        %v1108 = vrcp.pop %v1038
        %v1109 = vmul.f32 1.0, %v1108
        %v1110 = vrcp.pop %v1039
        %v1111 = vmul.f32 1.0, %v1110
        %v1112 = vrcp.pop %v1040
        %v1113 = vmul.f32 1.0, %v1112
        %v1114 = vrcp.pop %v1041
        %v1115 = vmul.f32 1.0, %v1114
        %v1116 = vrcp.pop %v1042
        %v1117 = vmul.f32 1.0, %v1116
        %v1118 = vrcp.pop %v1043
        %v1119 = vmul.f32 1.0, %v1118
        %v1120 = vrcp.pop %v1044
        %v1121 = vmul.f32 1.0, %v1120
        %v1122 = vrcp.pop %v1045
        %v1123 = vmul.f32 1.0, %v1122
        %v1124 = vrcp.pop %v1046
        %v1125 = vmul.f32 1.0, %v1124
        %v1126 = vrcp.pop %v1047
        %v1127 = vmul.f32 1.0, %v1126
        %v1128 = vrcp.pop %v1048
        %v1129 = vmul.f32 1.0, %v1128
        %v1130 = vrcp.pop %v1049
        %v1131 = vmul.f32 1.0, %v1130
        %v1132 = vrcp.pop %v1050
        %v1133 = vmul.f32 1.0, %v1132
        %v1134 = vrcp.pop %v1051
        %v1135 = vmul.f32 1.0, %v1134
        %v1136 = vrcp.pop %v1052
        %v1137 = vmul.f32 1.0, %v1136
        %v1138 = vrcp.pop %v1053
        %v1139 = vmul.f32 1.0, %v1138
        %v1140 = vrcp.pop %v1054
        %v1141 = vmul.f32 1.0, %v1140
        %v1142 = vrcp.pop %v1055
        %v1143 = vmul.f32 1.0, %v1142
        %v1144 = vrcp.pop %v1056
        %v1145 = vmul.f32 1.0, %v1144
        %v1146 = vrcp.pop %v1057
        %v1147 = vmul.f32 1.0, %v1146
        %v1148 = vrcp.pop %v1058
        %v1149 = vmul.f32 1.0, %v1148
        %v1150 = vrcp.pop %v1059
        %v1151 = vmul.f32 1.0, %v1150
        %v1152 = vrcp.pop %v1060
        %v1153 = vmul.f32 1.0, %v1152
        %v1154 = vrcp.pop %v1061
        %v1155 = vmul.f32 1.0, %v1154
        %v1156 = vrcp.pop %v1062
        %v1157 = vmul.f32 1.0, %v1156
        %v1158 = vrcp.pop %v1063
        %v1159 = vmul.f32 1.0, %v1158
        %v1160 = vrcp.pop %v1064
        %v1161 = vmul.f32 1.0, %v1160
        %v1162 = vrcp.pop %v1065
        %v1163 = vmul.f32 1.0, %v1162
        %v1164 = vrcp.pop %v1066
        %v1165 = vmul.f32 1.0, %v1164
        %v1166 = vrcp.pop %v1067
        %v1167 = vmul.f32 1.0, %v1166
        %v1168 = vrcp.pop %v1068
        %v1169 = vmul.f32 1.0, %v1168
        %v1170 = vrcp.pop %v1069
        %v1171 = vmul.f32 1.0, %v1170
        %v1172 = vrcp.pop %v1070
        %v1173 = vmul.f32 1.0, %v1172
        %v1174 = vrcp.pop %v1071
        %v1175 = vmul.f32 1.0, %v1174
        %v1176 = vrcp.pop %v1072
        %v1177 = vmul.f32 1.0, %v1176
        %v1178 = vrcp.pop %v1073
        %v1179 = vmul.f32 1.0, %v1178
        %v1180 = vrcp.pop %v1074
        %v1181 = vmul.f32 1.0, %v1180
        %v1182 = vrcp.pop %v1075
        %v1183 = vmul.f32 1.0, %v1182
        %v1184 = vrcp.pop %v1076
        %v1185 = vmul.f32 1.0, %v1184
        %v1186 = vrcp.pop %v1077
        %v1187 = vmul.f32 1.0, %v1186
        %v1188 = vrcp.pop %v1078
        %v1189 = vmul.f32 1.0, %v1188
        %v1190 = vrcp.pop %v1079
        %v1191 = vmul.f32 1.0, %v1190
        %v1192 = vrcp.pop %v1080
        %v1193 = vmul.f32 1.0, %v1192
        %v1194 = vrcp.pop %v1081
        %v1195 = vmul.f32 1.0, %v1194
        %v1196 = vrcp.pop %v1082
        %v1197 = vmul.f32 1.0, %v1196
        %v1198 = vrcp.pop %v1083
        %v1199 = vmul.f32 1.0, %v1198
        %v1200 = vrcp.pop %v1084
        %v1201 = vmul.f32 1.0, %v1200
        %v1202 = vrcp.pop %v1085
        %v1203 = vmul.f32 1.0, %v1202
        %v1204 = vrcp.pop %v1086
        %v1205 = vmul.f32 1.0, %v1204
        %v1206 = vrcp.pop %v1087
        %v1207 = vmul.f32 1.0, %v1206
        %v1208 = vrcp.pop %v1088
        %v1209 = vmul.f32 1.0, %v1208
        %v1210 = vrcp.pop %v1089
        %v1211 = vmul.f32 1.0, %v1210
        %v1212 = vrcp.pop %v1090
        %v1213 = vmul.f32 1.0, %v1212
        %v1214 = vrcp.pop %v1091
        %v1215 = vmul.f32 1.0, %v1214
        %v1216 = vrcp.pop %v1092
        %v1217 = vmul.f32 1.0, %v1216
        %v1218 = vrcp.pop %v1093
        %v1219 = vmul.f32 1.0, %v1218
        %v1220 = vrcp.pop %v1094
        %v1221 = vmul.f32 1.0, %v1220
        %v1222 = vrcp.pop %v1095
        %v1223 = vmul.f32 1.0, %v1222
        %v1224 = vmul.f32 %v776, %v1097
        %v1225 = vmul.f32 %v777, %v1099
        %v1226 = vmul.f32 %v778, %v1101
        %v1227 = vmul.f32 %v779, %v1103
        %v1228 = vmul.f32 %v780, %v1105
        %v1229 = vmul.f32 %v781, %v1107
        %v1230 = vmul.f32 %v782, %v1109
        %v1231 = vmul.f32 %v783, %v1111
        %v1232 = vmul.f32 %v784, %v1113
        %v1233 = vmul.f32 %v785, %v1115
        %v1234 = vmul.f32 %v786, %v1117
        %v1235 = vmul.f32 %v787, %v1119
        %v1236 = vmul.f32 %v788, %v1121
        %v1237 = vmul.f32 %v789, %v1123
        %v1238 = vmul.f32 %v790, %v1125
        %v1239 = vmul.f32 %v791, %v1127
        %v1240 = vmul.f32 %v792, %v1129
        %v1241 = vmul.f32 %v793, %v1131
        %v1242 = vmul.f32 %v794, %v1133
        %v1243 = vmul.f32 %v795, %v1135
        %v1244 = vmul.f32 %v796, %v1137
        %v1245 = vmul.f32 %v797, %v1139
        %v1246 = vmul.f32 %v798, %v1141
        %v1247 = vmul.f32 %v799, %v1143
        %v1248 = vmul.f32 %v800, %v1145
        %v1249 = vmul.f32 %v801, %v1147
        %v1250 = vmul.f32 %v802, %v1149
        %v1251 = vmul.f32 %v803, %v1151
        %v1252 = vmul.f32 %v804, %v1153
        %v1253 = vmul.f32 %v805, %v1155
        %v1254 = vmul.f32 %v806, %v1157
        %v1255 = vmul.f32 %v807, %v1159
        %v1256 = vmul.f32 %v808, %v1161
        %v1257 = vmul.f32 %v809, %v1163
        %v1258 = vmul.f32 %v810, %v1165
        %v1259 = vmul.f32 %v811, %v1167
        %v1260 = vmul.f32 %v812, %v1169
        %v1261 = vmul.f32 %v813, %v1171
        %v1262 = vmul.f32 %v814, %v1173
        %v1263 = vmul.f32 %v815, %v1175
        %v1264 = vmul.f32 %v816, %v1177
        %v1265 = vmul.f32 %v817, %v1179
        %v1266 = vmul.f32 %v818, %v1181
        %v1267 = vmul.f32 %v819, %v1183
        %v1268 = vmul.f32 %v820, %v1185
        %v1269 = vmul.f32 %v821, %v1187
        %v1270 = vmul.f32 %v822, %v1189
        %v1271 = vmul.f32 %v823, %v1191
        %v1272 = vmul.f32 %v824, %v1193
        %v1273 = vmul.f32 %v825, %v1195
        %v1274 = vmul.f32 %v826, %v1197
        %v1275 = vmul.f32 %v827, %v1199
        %v1276 = vmul.f32 %v828, %v1201
        %v1277 = vmul.f32 %v829, %v1203
        %v1278 = vmul.f32 %v830, %v1205
        %v1279 = vmul.f32 %v831, %v1207
        %v1280 = vmul.f32 %v832, %v1209
        %v1281 = vmul.f32 %v833, %v1211
        %v1282 = vmul.f32 %v834, %v1213
        %v1283 = vmul.f32 %v835, %v1215
        %v1284 = vmul.f32 %v836, %v1217
        %v1285 = vmul.f32 %v837, %v1219
        %v1286 = vmul.f32 %v838, %v1221
        %v1287 = vmul.f32 %v839, %v1223
        %vm1288 = vcmask 523264
        %1289 = vst.msk [vmem:[%s191] sm:$0xff] %vm1288, %v1224
        %1290 = vst.msk [vmem:[%s191 + $0x8] sm:$0xff] %vm1288, %v1225
        %1291 = vst.msk [vmem:[%s191 + $0x10] sm:$0xff] %vm1288, %v1226
        %1292 = vst.msk [vmem:[%s191 + $0x18] sm:$0xff] %vm1288, %v1227
        %1293 = vst.msk [vmem:[%s191 + $0x20] sm:$0xff] %vm1288, %v1228
        %1294 = vst.msk [vmem:[%s191 + $0x28] sm:$0xff] %vm1288, %v1229
        %1295 = vst.msk [vmem:[%s191 + $0x30] sm:$0xff] %vm1288, %v1230
        %1296 = vst.msk [vmem:[%s191 + $0x38] sm:$0xff] %vm1288, %v1231
        %1297 = vst.msk [vmem:[%s191 + $0x40] sm:$0xff] %vm1288, %v1232
        %1298 = vst.msk [vmem:[%s191 + $0x48] sm:$0xff] %vm1288, %v1233
        %1299 = vst.msk [vmem:[%s191 + $0x50] sm:$0xff] %vm1288, %v1234
        %1300 = vst.msk [vmem:[%s191 + $0x58] sm:$0xff] %vm1288, %v1235
        %1301 = vst.msk [vmem:[%s191 + $0x60] sm:$0xff] %vm1288, %v1236
        %1302 = vst.msk [vmem:[%s191 + $0x68] sm:$0xff] %vm1288, %v1237
        %1303 = vst.msk [vmem:[%s191 + $0x70] sm:$0xff] %vm1288, %v1238
        %1304 = vst.msk [vmem:[%s191 + $0x78] sm:$0xff] %vm1288, %v1239
        %1305 = vst.msk [vmem:[%s191 + $0x80] sm:$0xff] %vm1288, %v1240
        %1306 = vst.msk [vmem:[%s191 + $0x88] sm:$0xff] %vm1288, %v1241
        %1307 = vst.msk [vmem:[%s191 + $0x90] sm:$0xff] %vm1288, %v1242
        %1308 = vst.msk [vmem:[%s191 + $0x98] sm:$0xff] %vm1288, %v1243
        %1309 = vst.msk [vmem:[%s191 + $0xa0] sm:$0xff] %vm1288, %v1244
        %1310 = vst.msk [vmem:[%s191 + $0xa8] sm:$0xff] %vm1288, %v1245
        %1311 = vst.msk [vmem:[%s191 + $0xb0] sm:$0xff] %vm1288, %v1246
        %1312 = vst.msk [vmem:[%s191 + $0xb8] sm:$0xff] %vm1288, %v1247
        %1313 = vst.msk [vmem:[%s191 + $0xc0] sm:$0xff] %vm1288, %v1248
        %1314 = vst.msk [vmem:[%s191 + $0xc8] sm:$0xff] %vm1288, %v1249
        %1315 = vst.msk [vmem:[%s191 + $0xd0] sm:$0xff] %vm1288, %v1250
        %1316 = vst.msk [vmem:[%s191 + $0xd8] sm:$0xff] %vm1288, %v1251
        %1317 = vst.msk [vmem:[%s191 + $0xe0] sm:$0xff] %vm1288, %v1252
        %1318 = vst.msk [vmem:[%s191 + $0xe8] sm:$0xff] %vm1288, %v1253
        %1319 = vst.msk [vmem:[%s191 + $0xf0] sm:$0xff] %vm1288, %v1254
        %1320 = vst.msk [vmem:[%s191 + $0xf8] sm:$0xff] %vm1288, %v1255
        %1321 = vst.msk [vmem:[%s191 + $0x100] sm:$0xff] %vm1288, %v1256
        %1322 = vst.msk [vmem:[%s191 + $0x108] sm:$0xff] %vm1288, %v1257
        %1323 = vst.msk [vmem:[%s191 + $0x110] sm:$0xff] %vm1288, %v1258
        %1324 = vst.msk [vmem:[%s191 + $0x118] sm:$0xff] %vm1288, %v1259
        %1325 = vst.msk [vmem:[%s191 + $0x120] sm:$0xff] %vm1288, %v1260
        %1326 = vst.msk [vmem:[%s191 + $0x128] sm:$0xff] %vm1288, %v1261
        %1327 = vst.msk [vmem:[%s191 + $0x130] sm:$0xff] %vm1288, %v1262
        %1328 = vst.msk [vmem:[%s191 + $0x138] sm:$0xff] %vm1288, %v1263
        %1329 = vst.msk [vmem:[%s191 + $0x140] sm:$0xff] %vm1288, %v1264
        %1330 = vst.msk [vmem:[%s191 + $0x148] sm:$0xff] %vm1288, %v1265
        %1331 = vst.msk [vmem:[%s191 + $0x150] sm:$0xff] %vm1288, %v1266
        %1332 = vst.msk [vmem:[%s191 + $0x158] sm:$0xff] %vm1288, %v1267
        %1333 = vst.msk [vmem:[%s191 + $0x160] sm:$0xff] %vm1288, %v1268
        %1334 = vst.msk [vmem:[%s191 + $0x168] sm:$0xff] %vm1288, %v1269
        %1335 = vst.msk [vmem:[%s191 + $0x170] sm:$0xff] %vm1288, %v1270
        %1336 = vst.msk [vmem:[%s191 + $0x178] sm:$0xff] %vm1288, %v1271
        %1337 = vst.msk [vmem:[%s191 + $0x180] sm:$0xff] %vm1288, %v1272
        %1338 = vst.msk [vmem:[%s191 + $0x188] sm:$0xff] %vm1288, %v1273
        %1339 = vst.msk [vmem:[%s191 + $0x190] sm:$0xff] %vm1288, %v1274
        %1340 = vst.msk [vmem:[%s191 + $0x198] sm:$0xff] %vm1288, %v1275
        %1341 = vst.msk [vmem:[%s191 + $0x1a0] sm:$0xff] %vm1288, %v1276
        %1342 = vst.msk [vmem:[%s191 + $0x1a8] sm:$0xff] %vm1288, %v1277
        %1343 = vst.msk [vmem:[%s191 + $0x1b0] sm:$0xff] %vm1288, %v1278
        %1344 = vst.msk [vmem:[%s191 + $0x1b8] sm:$0xff] %vm1288, %v1279
        %1345 = vst.msk [vmem:[%s191 + $0x1c0] sm:$0xff] %vm1288, %v1280
        %1346 = vst.msk [vmem:[%s191 + $0x1c8] sm:$0xff] %vm1288, %v1281
        %1347 = vst.msk [vmem:[%s191 + $0x1d0] sm:$0xff] %vm1288, %v1282
        %1348 = vst.msk [vmem:[%s191 + $0x1d8] sm:$0xff] %vm1288, %v1283
        %1349 = vst.msk [vmem:[%s191 + $0x1e0] sm:$0xff] %vm1288, %v1284
        %1350 = vst.msk [vmem:[%s191 + $0x1e8] sm:$0xff] %vm1288, %v1285
        %1351 = vst.msk [vmem:[%s191 + $0x1f0] sm:$0xff] %vm1288, %v1286
        %1352 = vst.msk [vmem:[%s191 + $0x1f8] sm:$0xff] %vm1288, %v1287
        %s1353 = sand.u32 %s115, 1
        %s1354 = scalar_lea.sflag [#allocation3], %s1353
        %s1355 = sand.u32 %s115, 1
        %s1356 = smul.addr %s1355, 512
        %s1357 = scalar_lea.vmem [#allocation2], %s1356
        // Predicated region
        $region37: #{stem_conv_bn_swish.1} parent=35 // pred_check
          %p1358 = pneg %p125
        $region38: #{stem_conv_bn_swish.1} parent=35 // pred_check_branch
          %1360 = sbr.rel (%p1358) target = $region40
        $region39: #{stem_conv_bn_swish.1} parent=35 // pred_region
          %s1361 = smul.u32 64, %s18
          %s1363 = ssub.s32 8192, 8192
          %1364 = vsyncadd %s1354, %s1363
          %s1365 = smul.addr %s1361, 128
          %s1366 = scalar_lea.hbm %s4, %s1365
          %s1367 = sshll.u32 %s1357, 4
          %s1368 = int_to_ptr.vmem [resolvable:$true] %s1367
          %1373 = dma.vmem_to_hbm [thread:$0]  %s1368, 8192, %s1366, %s1354, 128, 128, 8
        $region40: #{stem_conv_bn_swish.1} parent=35 // pred_fallthru
          _
      $region36: #{stem_conv_bn_swish.1} parent=5 // pred_fallthru
        _
      %p1374 = scmp.le.s32.totalorder 2, %s13
      // Predicated region
      $region41: #{stem_conv_bn_swish.1} parent=5 // pred_check
        %p1375 = pneg %p1374
      $region42: #{stem_conv_bn_swish.1} parent=5 // pred_check_branch
        %1377 = sbr.rel (%p1375) target = $region44
      $region43: #{stem_conv_bn_swish.1} parent=5 // pred_region
        %s1378 = ssub.s32 %s13, 2
        // Predicated region
        $region45: #{stem_conv_bn_swish.1} parent=43 // pred_check
          %p1379 = pneg %p131
        $region46: #{stem_conv_bn_swish.1} parent=43 // pred_check_branch
          %1381 = sbr.rel (%p1379) target = $region48
        $region47: #{stem_conv_bn_swish.1} parent=43 // pred_region
          %s1382 = sand.u32 %s116, 1
          %s1383 = scalar_lea.sflag [#allocation3], %s1382
          %s1384 = sand.u32 %s116, 1
          %s1385 = smul.addr %s1384, 512
          %s1386 = scalar_lea.vmem [#allocation2], %s1385
          %1387 = dma.done %s1383, 8192
        $region48: #{stem_conv_bn_swish.1} parent=43 // pred_fallthru
          _
      $region44: #{stem_conv_bn_swish.1} parent=5 // pred_fallthru
        _
    $region6: #{stem_conv_bn_swish.1} parent=1 // loop_footer
      %s17 = sadd.s32 1, %s13
    $region7: #{stem_conv_bn_swish.1} parent=1 // loop_footer_branch
      %12 = sbr.rel target = $region3
    $region8: #{stem_conv_bn_swish.1} parent=1 // loop_exit
      _
    %1388 = vsyncpa [#allocation3], 1
    %s1389 = scalar_lea.sflag [#allocation3], 1
    %1390 = vsyncpa %s1389, 1

</llo_original>
